<compile_context>
chip_gen: v6e
topology: v6e:2x2x1
jax: 0.10.0
libtpu: 0.0.40
codegen_flags: <defaults>
</compile_context>

<pallas_src>
import numpy as np
import jax
import jax.numpy as jnp
from jax import lax
from jax.experimental import pallas as pl
from jax.experimental.pallas import tpu as pltpu


def lstm_encoder_kernel(x_ref, len_ref, wih_ref, whh_ref, b_ref, out_ref):
    """Single-layer unidirectional LSTM with length masking (packed-seq semantics).

    x_ref:   [B*T, D]      f32  batch-major flattened input (row = b*T + t)
    len_ref: [B, 1]        i32  sequence lengths (>= 1)
    wih_ref: [D, 4H]       f32  W_ih^T, i/f/o columns pre-scaled by 0.5
    whh_ref: [H, 4H]       f32  W_hh^T, i/f/o columns pre-scaled by 0.5
    b_ref:   [1, 4H]       f32  b_ih + b_hh, i/f/o lanes pre-scaled by 0.5
    out_ref: [B, (T+4)*H]  f32  lane-dense slab:
                                 [:, :T*H]           rnn_output (batch-first)
                                 [:, T*H+0H:T*H+1H]  h_final
                                 [:, T*H+1H:T*H+2H]  c_final
                                 [:, T*H+2H:T*H+3H]  embedded
                                 [:, T*H+3H:]        zero pad (lane-density)
    """
    TB, D = x_ref.shape
    H = whh_ref.shape[0]
    B = len_ref.shape[0]
    T = TB // B
    G = 4 * H

    # --- hoisted, loop-invariant reads / constants ---------------------------
    whh = whh_ref[...]                                # [H, 4H] lives in vregs
    lengths = len_ref[...]                            # [B, 1] int32

    # Lane masks to recover sigmoid from tanh on i/f/o lanes (g lanes pass-through).
    lane = lax.broadcasted_iota(jnp.int32, (1, G), 1)
    is_g = (lane >= 2 * H) & (lane < 3 * H)
    post_a = jnp.where(is_g, 1.0, 0.5).astype(jnp.float32)   # tanh scale
    post_b = jnp.where(is_g, 0.0, 0.5).astype(jnp.float32)   # tanh offset

    # Validity / last-step masks for all timesteps, one vectorized shot.
    t_iota = lax.broadcasted_iota(jnp.int32, (B, T), 1)
    valid_all = t_iota < lengths                      # [B, T]
    last_all = t_iota == (lengths - 1)                # [B, T]

    # --- input projection for ALL timesteps: a single MXU push ---------------
    gates_x = jnp.dot(x_ref[...], wih_ref[...],
                      preferred_element_type=jnp.float32) + b_ref[...]  # [B*T, 4H]
    gates_x = gates_x.reshape(B, T, G)                # tile-aligned sublane split

    # --- recurrence: carried in registers, fully unrolled (T static) ---------
    h = jnp.zeros((B, H), jnp.float32)
    c = jnp.zeros((B, H), jnp.float32)
    emb = jnp.zeros((B, H), jnp.float32)
    for t in range(T):
        gates = gates_x[:, t, :] + jnp.dot(
            h, whh, preferred_element_type=jnp.float32)          # [B, 4H]

        # One full-width EUP tanh; sigmoids recovered as 0.5*t+0.5 on i/f/o lanes.
        t_all = jnp.tanh(gates)
        act = t_all * post_a + post_b                            # [B, 4H]
        i_g = act[:, 0 * H:1 * H]
        f_g = act[:, 1 * H:2 * H]
        g_g = act[:, 2 * H:3 * H]
        o_g = act[:, 3 * H:4 * H]

        c_new = f_g * c + i_g * g_g
        h_new = o_g * jnp.tanh(c_new)

        valid = valid_all[:, t:t + 1]                 # [B, 1] packed-seq mask
        h = jnp.where(valid, h_new, h)
        c = jnp.where(valid, c_new, c)
        emb = jnp.where(last_all[:, t:t + 1], h_new, emb)

        # Per-step store into the VMEM output tile (idle vst slot; single HBM
        # writeback DMA for the whole slab at the end).
        out_ref[:, t * H:(t + 1) * H] = jnp.where(valid, h_new, 0.0)

    # --- final states packed into the tail of the same lane-dense slab -------
    out_ref[:, T * H:] = jnp.concatenate(
        [h, c, emb, jnp.zeros((B, H), jnp.float32)], axis=1)     # [B, 4H] full vreg


def prepare_encoder_params(w_ih, w_hh, b_ih, b_hh):
    """One-time parameter prep (OUTSIDE the per-call hot path).

    PyTorch layout in: w_ih [4H, D], w_hh [4H, H], b_ih/b_hh [4H]
    (gate order i, f, g, o).  Returns transposed weights with the i/f/o gate
    columns pre-scaled by 0.5 and the biases summed+scaled, so the kernel can
    compute sigmoid(x) = 0.5*tanh(x/2)+0.5 with a single full-width tanh.
    Scaling by 0.5 is exact in float, so numerics are unchanged.
    """
    H = w_hh.shape[1]
    lane = jnp.arange(4 * H)
    scale = jnp.where((lane >= 2 * H) & (lane < 3 * H), 1.0, 0.5).astype(jnp.float32)
    wih_s = jnp.transpose(w_ih) * scale[None, :]          # [D, 4H]
    whh_s = jnp.transpose(w_hh) * scale[None, :]          # [H, 4H]
    b_s = ((b_ih + b_hh) * scale).reshape(1, 4 * H)       # [1, 4H]
    return wih_s, whh_s, b_s


def encoder_forward(x, lengths, wih_s, whh_s, b_s):
    """x: [B, T, D] f32, lengths: [B] i32 (must be >= 1, as
    pack_padded_sequence requires).  Weights from prepare_encoder_params.
    Returns (embedded, (h_n, c_n), rnn_output) matching the PyTorch module
    (rnn_output returned as well since it is produced anyway).
    """
    B, T, D = x.shape
    H = whh_s.shape[0]

    x2d = x.reshape(B * T, D)                        # contiguous -> free reshape
    len2d = lengths.astype(jnp.int32).reshape(B, 1)

    vmem = pl.BlockSpec(memory_space=pltpu.MemorySpace.VMEM)
    out = pl.pallas_call(
        lstm_encoder_kernel,
        out_shape=jax.ShapeDtypeStruct((B, (T + 4) * H), jnp.float32),
        in_specs=[vmem] * 5,
        out_specs=vmem,
    )(x2d, len2d, wih_s, whh_s, b_s)

    rnn_output = out[:, :T * H].reshape(B, T, H)     # free contiguous reshape
    h_f = out[:, T * H + 0 * H:T * H + 1 * H]
    c_f = out[:, T * H + 1 * H:T * H + 2 * H]
    emb = out[:, T * H + 2 * H:T * H + 3 * H]
    next_hidden = (h_f[None], c_f[None])             # [1, B, H] each
    return emb, next_hidden, rnn_output


def reference_forward(x, lengths, w_ih, w_hh, b_ih, b_hh):
    """Pure-JAX reference (mirrors packed-sequence LSTM semantics)."""
    B, T, D = x.shape
    H = w_hh.shape[1]

    def cell(carry, inp):
        h, c = carry
        x_t, t = inp
        gates = x_t @ w_ih.T + h @ w_hh.T + b_ih + b_hh
        i_g, f_g, g_g, o_g = jnp.split(gates, 4, axis=-1)
        i_g = jax.nn.sigmoid(i_g)
        f_g = jax.nn.sigmoid(f_g)
        g_g = jnp.tanh(g_g)
        o_g = jax.nn.sigmoid(o_g)
        c_new = f_g * c + i_g * g_g
        h_new = o_g * jnp.tanh(c_new)
        valid = (t < lengths)[:, None]
        h = jnp.where(valid, h_new, h)
        c = jnp.where(valid, c_new, c)
        out = jnp.where(valid, h_new, 0.0)
        return (h, c), out

    h0 = jnp.zeros((B, H), jnp.float32)
    c0 = jnp.zeros((B, H), jnp.float32)
    (h, c), outs = lax.scan(cell, (h0, c0),
                            (jnp.transpose(x, (1, 0, 2)), jnp.arange(T)))
    outs = jnp.transpose(outs, (1, 0, 2))
    emb = outs[jnp.arange(B), lengths - 1]
    return emb, h, c, outs


if __name__ == "__main__":
    # params = {'input_size': 16, 'encoder_dim': 32, 'n_layers': 1,
    #           'layer': 'LSTM', 'is_bidirectional': False, 'dropout': 0}
    B, T, D, H = 2, 8, 16, 32

    key = jax.random.PRNGKey(0)
    kx, kwih, kwhh, kbih, kbhh = jax.random.split(key, 5)

    x = jax.random.normal(kx, (B, T, D), dtype=jnp.float32)
    lengths = jnp.array([8, 5], dtype=jnp.int32)
    assert int(lengths.min()) >= 1  # pack_padded_sequence requires lengths >= 1

    # Deterministic weight init matching nn.LSTM's uniform(-1/sqrt(H), 1/sqrt(H)).
    k = 1.0 / np.sqrt(H)
    w_ih = jax.random.uniform(kwih, (4 * H, D), jnp.float32, -k, k)
    w_hh = jax.random.uniform(kwhh, (4 * H, H), jnp.float32, -k, k)
    b_ih = jax.random.uniform(kbih, (4 * H,), jnp.float32, -k, k)
    b_hh = jax.random.uniform(kbhh, (4 * H,), jnp.float32, -k, k)

    # One-time parameter prep (kept out of the jitted hot path on purpose).
    wih_s, whh_s, b_s = prepare_encoder_params(w_ih, w_hh, b_ih, b_hh)

    fwd = jax.jit(encoder_forward)
    emb, (h_n, c_n), rnn_out = fwd(x, lengths, wih_s, whh_s, b_s)
    jax.block_until_ready((emb, h_n, c_n, rnn_out))

    emb_r, h_r, c_r, out_r = reference_forward(x, lengths, w_ih, w_hh, b_ih, b_hh)
    np.testing.assert_allclose(np.asarray(emb), np.asarray(emb_r), rtol=2e-5, atol=2e-5)
    np.testing.assert_allclose(np.asarray(h_n[0]), np.asarray(h_r), rtol=2e-5, atol=2e-5)
    np.testing.assert_allclose(np.asarray(c_n[0]), np.asarray(c_r), rtol=2e-5, atol=2e-5)
    np.testing.assert_allclose(np.asarray(rnn_out), np.asarray(out_r), rtol=2e-5, atol=2e-5)

    assert emb.shape == (B, H) and h_n.shape == (1, B, H) and c_n.shape == (1, B, H)
    print("KERNEL_OK")
</pallas_src>

<mosaic_0001>
module attributes {stable_mosaic.version = 11 : i64} {
  func.func @lstm_encoder_kernel(%arg0: memref<16x16xf32, #tpu.memory_space<vmem>>, %arg1: memref<2x1xi32, #tpu.memory_space<vmem>>, %arg2: memref<16x128xf32, #tpu.memory_space<vmem>>, %arg3: memref<32x128xf32, #tpu.memory_space<vmem>>, %arg4: memref<1x128xf32, #tpu.memory_space<vmem>>, %arg5: memref<2x384xf32, #tpu.memory_space<vmem>>) attributes {dimension_semantics = [], scalar_prefetch = 0 : i64, scratch_operands = 0 : i64, tpu.core_type = #tpu.core_type<tc>} {
    %c0 = arith.constant 0 : index
    %c0_0 = arith.constant 0 : index
    %0 = vector.load %arg3[%c0, %c0_0] : memref<32x128xf32, #tpu.memory_space<vmem>>, vector<32x128xf32>
    %c0_1 = arith.constant 0 : index
    %c0_2 = arith.constant 0 : index
    %1 = vector.load %arg1[%c0_1, %c0_2] : memref<2x1xi32, #tpu.memory_space<vmem>>, vector<2x1xi32>
    %2 = tpu.iota {dimensions = array<i32: 1>} : vector<1x128xi32>
    %c64_i32 = arith.constant 64 : i32
    %3 = vector.broadcast %c64_i32 : i32 to vector<1x128xi32>
    %4 = arith.cmpi sge, %2, %3 : vector<1x128xi32>
    %c96_i32 = arith.constant 96 : i32
    %5 = vector.broadcast %c96_i32 : i32 to vector<1x128xi32>
    %6 = arith.cmpi slt, %2, %5 : vector<1x128xi32>
    %7 = arith.andi %4, %6 : vector<1x128xi1>
    %cst = arith.constant 1.000000e+00 : f32
    %cst_3 = arith.constant 5.000000e-01 : f32
    %8 = vector.broadcast %cst : f32 to vector<1x128xf32>
    %9 = vector.broadcast %cst_3 : f32 to vector<1x128xf32>
    %10 = arith.select %7, %8, %9 : vector<1x128xi1>, vector<1x128xf32>
    %cst_4 = arith.constant 0.000000e+00 : f32
    %cst_5 = arith.constant 5.000000e-01 : f32
    %11 = vector.broadcast %cst_4 : f32 to vector<1x128xf32>
    %12 = vector.broadcast %cst_5 : f32 to vector<1x128xf32>
    %13 = arith.select %7, %11, %12 : vector<1x128xi1>, vector<1x128xf32>
    %14 = tpu.iota {dimensions = array<i32: 1>} : vector<2x8xi32>
    %15 = vector.broadcast %1 : vector<2x1xi32> to vector<2x8xi32>
    %16 = arith.cmpi slt, %14, %15 : vector<2x8xi32>
    %c1_i32 = arith.constant 1 : i32
    %17 = vector.broadcast %c1_i32 : i32 to vector<2x1xi32>
    %18 = arith.subi %1, %17 : vector<2x1xi32>
    %19 = vector.broadcast %18 : vector<2x1xi32> to vector<2x8xi32>
    %20 = arith.cmpi eq, %14, %19 : vector<2x8xi32>
    %c0_6 = arith.constant 0 : index
    %c0_7 = arith.constant 0 : index
    %21 = vector.load %arg0[%c0_6, %c0_7] : memref<16x16xf32, #tpu.memory_space<vmem>>, vector<16x16xf32>
    %c0_8 = arith.constant 0 : index
    %c0_9 = arith.constant 0 : index
    %22 = vector.load %arg2[%c0_8, %c0_9] : memref<16x128xf32, #tpu.memory_space<vmem>>, vector<16x128xf32>
    %cst_10 = arith.constant dense<0.000000e+00> : vector<16x128xf32>
    %23 = tpu.matmul %21, %22, %cst_10 {dimension_numbers = #tpu.dot_dimension_numbers<[1], [0], [0], [1], [0, 0, 1, 1], [], []>} : vector<16x16xf32>, vector<16x128xf32>, vector<16x128xf32> -> vector<16x128xf32>
    %c0_11 = arith.constant 0 : index
    %c0_12 = arith.constant 0 : index
    %24 = vector.load %arg4[%c0_11, %c0_12] : memref<1x128xf32, #tpu.memory_space<vmem>>, vector<1x128xf32>
    %25 = vector.broadcast %24 : vector<1x128xf32> to vector<16x128xf32>
    %26 = arith.addf %23, %25 : vector<16x128xf32>
    %27 = vector.shape_cast %26 : vector<16x128xf32> to vector<2x8x128xf32>
    %cst_13 = arith.constant 0.000000e+00 : f32
    %28 = vector.broadcast %cst_13 : f32 to vector<2x32xf32>
    %cst_14 = arith.constant 0.000000e+00 : f32
    %29 = vector.broadcast %cst_14 : f32 to vector<2x32xf32>
    %cst_15 = arith.constant 0.000000e+00 : f32
    %30 = vector.broadcast %cst_15 : f32 to vector<2x32xf32>
    %31 = vector.extract_strided_slice %27 {offsets = [0, 0, 0], sizes = [2, 1, 128], strides = [1, 1, 1]} : vector<2x8x128xf32> to vector<2x1x128xf32>
    %32 = vector.shape_cast %31 : vector<2x1x128xf32> to vector<2x128xf32>
    %cst_16 = arith.constant dense<0.000000e+00> : vector<2x128xf32>
    %33 = tpu.matmul %28, %0, %cst_16 {dimension_numbers = #tpu.dot_dimension_numbers<[1], [0], [0], [1], [0, 0, 1, 1], [], []>} : vector<2x32xf32>, vector<32x128xf32>, vector<2x128xf32> -> vector<2x128xf32>
    %34 = arith.addf %32, %33 : vector<2x128xf32>
    %35 = math.tanh %34 : vector<2x128xf32>
    %36 = vector.broadcast %10 : vector<1x128xf32> to vector<2x128xf32>
    %37 = arith.mulf %35, %36 : vector<2x128xf32>
    %38 = vector.broadcast %13 : vector<1x128xf32> to vector<2x128xf32>
    %39 = arith.addf %37, %38 : vector<2x128xf32>
    %40 = vector.extract_strided_slice %39 {offsets = [0, 0], sizes = [2, 32], strides = [1, 1]} : vector<2x128xf32> to vector<2x32xf32>
    %41 = vector.extract_strided_slice %39 {offsets = [0, 32], sizes = [2, 32], strides = [1, 1]} : vector<2x128xf32> to vector<2x32xf32>
    %42 = vector.extract_strided_slice %39 {offsets = [0, 64], sizes = [2, 32], strides = [1, 1]} : vector<2x128xf32> to vector<2x32xf32>
    %43 = vector.extract_strided_slice %39 {offsets = [0, 96], sizes = [2, 32], strides = [1, 1]} : vector<2x128xf32> to vector<2x32xf32>
    %44 = arith.mulf %41, %29 : vector<2x32xf32>
    %45 = arith.mulf %40, %42 : vector<2x32xf32>
    %46 = arith.addf %44, %45 : vector<2x32xf32>
    %47 = math.tanh %46 : vector<2x32xf32>
    %48 = arith.mulf %43, %47 : vector<2x32xf32>
    %49 = vector.extract_strided_slice %16 {offsets = [0, 0], sizes = [2, 1], strides = [1, 1]} : vector<2x8xi1> to vector<2x1xi1>
    %50 = vector.shape_cast %49 : vector<2x1xi1> to vector<2x1xi1>
    %51 = vector.broadcast %50 : vector<2x1xi1> to vector<2x32xi1>
    %52 = arith.select %51, %48, %28 : vector<2x32xi1>, vector<2x32xf32>
    %53 = vector.shape_cast %49 : vector<2x1xi1> to vector<2x1xi1>
    %54 = vector.broadcast %53 : vector<2x1xi1> to vector<2x32xi1>
    %55 = arith.select %54, %46, %29 : vector<2x32xi1>, vector<2x32xf32>
    %56 = vector.extract_strided_slice %20 {offsets = [0, 0], sizes = [2, 1], strides = [1, 1]} : vector<2x8xi1> to vector<2x1xi1>
    %57 = vector.shape_cast %56 : vector<2x1xi1> to vector<2x1xi1>
    %58 = vector.broadcast %57 : vector<2x1xi1> to vector<2x32xi1>
    %59 = arith.select %58, %48, %30 : vector<2x32xi1>, vector<2x32xf32>
    %cst_17 = arith.constant 0.000000e+00 : f32
    %60 = vector.shape_cast %49 : vector<2x1xi1> to vector<2x1xi1>
    %61 = vector.broadcast %60 : vector<2x1xi1> to vector<2x32xi1>
    %62 = vector.broadcast %cst_17 : f32 to vector<2x32xf32>
    %63 = arith.select %61, %48, %62 : vector<2x32xi1>, vector<2x32xf32>
    %c0_18 = arith.constant 0 : index
    %c0_19 = arith.constant 0 : index
    %64 = vector.load %arg5[%c0_18, %c0_19] : memref<2x384xf32, #tpu.memory_space<vmem>>, vector<2x32xf32>
    tpu.vector_store %arg5[%c0_18, %c0_19], %63 {strides = array<i32>} : memref<2x384xf32, #tpu.memory_space<vmem>>, vector<2x32xf32>,
    %65 = vector.extract_strided_slice %27 {offsets = [0, 1, 0], sizes = [2, 1, 128], strides = [1, 1, 1]} : vector<2x8x128xf32> to vector<2x1x128xf32>
    %66 = vector.shape_cast %65 : vector<2x1x128xf32> to vector<2x128xf32>
    %cst_20 = arith.constant dense<0.000000e+00> : vector<2x128xf32>
    %67 = tpu.matmul %52, %0, %cst_20 {dimension_numbers = #tpu.dot_dimension_numbers<[1], [0], [0], [1], [0, 0, 1, 1], [], []>} : vector<2x32xf32>, vector<32x128xf32>, vector<2x128xf32> -> vector<2x128xf32>
    %68 = arith.addf %66, %67 : vector<2x128xf32>
    %69 = math.tanh %68 : vector<2x128xf32>
    %70 = vector.broadcast %10 : vector<1x128xf32> to vector<2x128xf32>
    %71 = arith.mulf %69, %70 : vector<2x128xf32>
    %72 = vector.broadcast %13 : vector<1x128xf32> to vector<2x128xf32>
    %73 = arith.addf %71, %72 : vector<2x128xf32>
    %74 = vector.extract_strided_slice %73 {offsets = [0, 0], sizes = [2, 32], strides = [1, 1]} : vector<2x128xf32> to vector<2x32xf32>
    %75 = vector.extract_strided_slice %73 {offsets = [0, 32], sizes = [2, 32], strides = [1, 1]} : vector<2x128xf32> to vector<2x32xf32>
    %76 = vector.extract_strided_slice %73 {offsets = [0, 64], sizes = [2, 32], strides = [1, 1]} : vector<2x128xf32> to vector<2x32xf32>
    %77 = vector.extract_strided_slice %73 {offsets = [0, 96], sizes = [2, 32], strides = [1, 1]} : vector<2x128xf32> to vector<2x32xf32>
    %78 = arith.mulf %75, %55 : vector<2x32xf32>
    %79 = arith.mulf %74, %76 : vector<2x32xf32>
    %80 = arith.addf %78, %79 : vector<2x32xf32>
    %81 = math.tanh %80 : vector<2x32xf32>
    %82 = arith.mulf %77, %81 : vector<2x32xf32>
    %83 = vector.extract_strided_slice %16 {offsets = [0, 1], sizes = [2, 1], strides = [1, 1]} : vector<2x8xi1> to vector<2x1xi1>
    %84 = vector.shape_cast %83 : vector<2x1xi1> to vector<2x1xi1>
    %85 = vector.broadcast %84 : vector<2x1xi1> to vector<2x32xi1>
    %86 = arith.select %85, %82, %52 : vector<2x32xi1>, vector<2x32xf32>
    %87 = vector.shape_cast %83 : vector<2x1xi1> to vector<2x1xi1>
    %88 = vector.broadcast %87 : vector<2x1xi1> to vector<2x32xi1>
    %89 = arith.select %88, %80, %55 : vector<2x32xi1>, vector<2x32xf32>
    %90 = vector.extract_strided_slice %20 {offsets = [0, 1], sizes = [2, 1], strides = [1, 1]} : vector<2x8xi1> to vector<2x1xi1>
    %91 = vector.shape_cast %90 : vector<2x1xi1> to vector<2x1xi1>
    %92 = vector.broadcast %91 : vector<2x1xi1> to vector<2x32xi1>
    %93 = arith.select %92, %82, %59 : vector<2x32xi1>, vector<2x32xf32>
    %cst_21 = arith.constant 0.000000e+00 : f32
    %94 = vector.shape_cast %83 : vector<2x1xi1> to vector<2x1xi1>
    %95 = vector.broadcast %94 : vector<2x1xi1> to vector<2x32xi1>
    %96 = vector.broadcast %cst_21 : f32 to vector<2x32xf32>
    %97 = arith.select %95, %82, %96 : vector<2x32xi1>, vector<2x32xf32>
    %c0_22 = arith.constant 0 : index
    %c32 = arith.constant 32 : index
    %98 = vector.load %arg5[%c0_22, %c32] : memref<2x384xf32, #tpu.memory_space<vmem>>, vector<2x32xf32>
    tpu.vector_store %arg5[%c0_22, %c32], %97 {strides = array<i32>} : memref<2x384xf32, #tpu.memory_space<vmem>>, vector<2x32xf32>,
    %99 = vector.extract_strided_slice %27 {offsets = [0, 2, 0], sizes = [2, 1, 128], strides = [1, 1, 1]} : vector<2x8x128xf32> to vector<2x1x128xf32>
    %100 = vector.shape_cast %99 : vector<2x1x128xf32> to vector<2x128xf32>
    %cst_23 = arith.constant dense<0.000000e+00> : vector<2x128xf32>
    %101 = tpu.matmul %86, %0, %cst_23 {dimension_numbers = #tpu.dot_dimension_numbers<[1], [0], [0], [1], [0, 0, 1, 1], [], []>} : vector<2x32xf32>, vector<32x128xf32>, vector<2x128xf32> -> vector<2x128xf32>
    %102 = arith.addf %100, %101 : vector<2x128xf32>
    %103 = math.tanh %102 : vector<2x128xf32>
    %104 = vector.broadcast %10 : vector<1x128xf32> to vector<2x128xf32>
    %105 = arith.mulf %103, %104 : vector<2x128xf32>
    %106 = vector.broadcast %13 : vector<1x128xf32> to vector<2x128xf32>
    %107 = arith.addf %105, %106 : vector<2x128xf32>
    %108 = vector.extract_strided_slice %107 {offsets = [0, 0], sizes = [2, 32], strides = [1, 1]} : vector<2x128xf32> to vector<2x32xf32>
    %109 = vector.extract_strided_slice %107 {offsets = [0, 32], sizes = [2, 32], strides = [1, 1]} : vector<2x128xf32> to vector<2x32xf32>
    %110 = vector.extract_strided_slice %107 {offsets = [0, 64], sizes = [2, 32], strides = [1, 1]} : vector<2x128xf32> to vector<2x32xf32>
    %111 = vector.extract_strided_slice %107 {offsets = [0, 96], sizes = [2, 32], strides = [1, 1]} : vector<2x128xf32> to vector<2x32xf32>
    %112 = arith.mulf %109, %89 : vector<2x32xf32>
    %113 = arith.mulf %108, %110 : vector<2x32xf32>
    %114 = arith.addf %112, %113 : vector<2x32xf32>
    %115 = math.tanh %114 : vector<2x32xf32>
    %116 = arith.mulf %111, %115 : vector<2x32xf32>
    %117 = vector.extract_strided_slice %16 {offsets = [0, 2], sizes = [2, 1], strides = [1, 1]} : vector<2x8xi1> to vector<2x1xi1>
    %118 = vector.shape_cast %117 : vector<2x1xi1> to vector<2x1xi1>
    %119 = vector.broadcast %118 : vector<2x1xi1> to vector<2x32xi1>
    %120 = arith.select %119, %116, %86 : vector<2x32xi1>, vector<2x32xf32>
    %121 = vector.shape_cast %117 : vector<2x1xi1> to vector<2x1xi1>
    %122 = vector.broadcast %121 : vector<2x1xi1> to vector<2x32xi1>
    %123 = arith.select %122, %114, %89 : vector<2x32xi1>, vector<2x32xf32>
    %124 = vector.extract_strided_slice %20 {offsets = [0, 2], sizes = [2, 1], strides = [1, 1]} : vector<2x8xi1> to vector<2x1xi1>
    %125 = vector.shape_cast %124 : vector<2x1xi1> to vector<2x1xi1>
    %126 = vector.broadcast %125 : vector<2x1xi1> to vector<2x32xi1>
    %127 = arith.select %126, %116, %93 : vector<2x32xi1>, vector<2x32xf32>
    %cst_24 = arith.constant 0.000000e+00 : f32
    %128 = vector.shape_cast %117 : vector<2x1xi1> to vector<2x1xi1>
    %129 = vector.broadcast %128 : vector<2x1xi1> to vector<2x32xi1>
    %130 = vector.broadcast %cst_24 : f32 to vector<2x32xf32>
    %131 = arith.select %129, %116, %130 : vector<2x32xi1>, vector<2x32xf32>
    %c0_25 = arith.constant 0 : index
    %c64 = arith.constant 64 : index
    %132 = vector.load %arg5[%c0_25, %c64] : memref<2x384xf32, #tpu.memory_space<vmem>>, vector<2x32xf32>
    tpu.vector_store %arg5[%c0_25, %c64], %131 {strides = array<i32>} : memref<2x384xf32, #tpu.memory_space<vmem>>, vector<2x32xf32>,
    %133 = vector.extract_strided_slice %27 {offsets = [0, 3, 0], sizes = [2, 1, 128], strides = [1, 1, 1]} : vector<2x8x128xf32> to vector<2x1x128xf32>
    %134 = vector.shape_cast %133 : vector<2x1x128xf32> to vector<2x128xf32>
    %cst_26 = arith.constant dense<0.000000e+00> : vector<2x128xf32>
    %135 = tpu.matmul %120, %0, %cst_26 {dimension_numbers = #tpu.dot_dimension_numbers<[1], [0], [0], [1], [0, 0, 1, 1], [], []>} : vector<2x32xf32>, vector<32x128xf32>, vector<2x128xf32> -> vector<2x128xf32>
    %136 = arith.addf %134, %135 : vector<2x128xf32>
    %137 = math.tanh %136 : vector<2x128xf32>
    %138 = vector.broadcast %10 : vector<1x128xf32> to vector<2x128xf32>
    %139 = arith.mulf %137, %138 : vector<2x128xf32>
    %140 = vector.broadcast %13 : vector<1x128xf32> to vector<2x128xf32>
    %141 = arith.addf %139, %140 : vector<2x128xf32>
    %142 = vector.extract_strided_slice %141 {offsets = [0, 0], sizes = [2, 32], strides = [1, 1]} : vector<2x128xf32> to vector<2x32xf32>
    %143 = vector.extract_strided_slice %141 {offsets = [0, 32], sizes = [2, 32], strides = [1, 1]} : vector<2x128xf32> to vector<2x32xf32>
    %144 = vector.extract_strided_slice %141 {offsets = [0, 64], sizes = [2, 32], strides = [1, 1]} : vector<2x128xf32> to vector<2x32xf32>
    %145 = vector.extract_strided_slice %141 {offsets = [0, 96], sizes = [2, 32], strides = [1, 1]} : vector<2x128xf32> to vector<2x32xf32>
    %146 = arith.mulf %143, %123 : vector<2x32xf32>
    %147 = arith.mulf %142, %144 : vector<2x32xf32>
    %148 = arith.addf %146, %147 : vector<2x32xf32>
    %149 = math.tanh %148 : vector<2x32xf32>
    %150 = arith.mulf %145, %149 : vector<2x32xf32>
    %151 = vector.extract_strided_slice %16 {offsets = [0, 3], sizes = [2, 1], strides = [1, 1]} : vector<2x8xi1> to vector<2x1xi1>
    %152 = vector.shape_cast %151 : vector<2x1xi1> to vector<2x1xi1>
    %153 = vector.broadcast %152 : vector<2x1xi1> to vector<2x32xi1>
    %154 = arith.select %153, %150, %120 : vector<2x32xi1>, vector<2x32xf32>
    %155 = vector.shape_cast %151 : vector<2x1xi1> to vector<2x1xi1>
    %156 = vector.broadcast %155 : vector<2x1xi1> to vector<2x32xi1>
    %157 = arith.select %156, %148, %123 : vector<2x32xi1>, vector<2x32xf32>
    %158 = vector.extract_strided_slice %20 {offsets = [0, 3], sizes = [2, 1], strides = [1, 1]} : vector<2x8xi1> to vector<2x1xi1>
    %159 = vector.shape_cast %158 : vector<2x1xi1> to vector<2x1xi1>
    %160 = vector.broadcast %159 : vector<2x1xi1> to vector<2x32xi1>
    %161 = arith.select %160, %150, %127 : vector<2x32xi1>, vector<2x32xf32>
    %cst_27 = arith.constant 0.000000e+00 : f32
    %162 = vector.shape_cast %151 : vector<2x1xi1> to vector<2x1xi1>
    %163 = vector.broadcast %162 : vector<2x1xi1> to vector<2x32xi1>
    %164 = vector.broadcast %cst_27 : f32 to vector<2x32xf32>
    %165 = arith.select %163, %150, %164 : vector<2x32xi1>, vector<2x32xf32>
    %c0_28 = arith.constant 0 : index
    %c96 = arith.constant 96 : index
    %166 = vector.load %arg5[%c0_28, %c96] : memref<2x384xf32, #tpu.memory_space<vmem>>, vector<2x32xf32>
    tpu.vector_store %arg5[%c0_28, %c96], %165 {strides = array<i32>} : memref<2x384xf32, #tpu.memory_space<vmem>>, vector<2x32xf32>,
    %167 = vector.extract_strided_slice %27 {offsets = [0, 4, 0], sizes = [2, 1, 128], strides = [1, 1, 1]} : vector<2x8x128xf32> to vector<2x1x128xf32>
    %168 = vector.shape_cast %167 : vector<2x1x128xf32> to vector<2x128xf32>
    %cst_29 = arith.constant dense<0.000000e+00> : vector<2x128xf32>
    %169 = tpu.matmul %154, %0, %cst_29 {dimension_numbers = #tpu.dot_dimension_numbers<[1], [0], [0], [1], [0, 0, 1, 1], [], []>} : vector<2x32xf32>, vector<32x128xf32>, vector<2x128xf32> -> vector<2x128xf32>
    %170 = arith.addf %168, %169 : vector<2x128xf32>
    %171 = math.tanh %170 : vector<2x128xf32>
    %172 = vector.broadcast %10 : vector<1x128xf32> to vector<2x128xf32>
    %173 = arith.mulf %171, %172 : vector<2x128xf32>
    %174 = vector.broadcast %13 : vector<1x128xf32> to vector<2x128xf32>
    %175 = arith.addf %173, %174 : vector<2x128xf32>
    %176 = vector.extract_strided_slice %175 {offsets = [0, 0], sizes = [2, 32], strides = [1, 1]} : vector<2x128xf32> to vector<2x32xf32>
    %177 = vector.extract_strided_slice %175 {offsets = [0, 32], sizes = [2, 32], strides = [1, 1]} : vector<2x128xf32> to vector<2x32xf32>
    %178 = vector.extract_strided_slice %175 {offsets = [0, 64], sizes = [2, 32], strides = [1, 1]} : vector<2x128xf32> to vector<2x32xf32>
    %179 = vector.extract_strided_slice %175 {offsets = [0, 96], sizes = [2, 32], strides = [1, 1]} : vector<2x128xf32> to vector<2x32xf32>
    %180 = arith.mulf %177, %157 : vector<2x32xf32>
    %181 = arith.mulf %176, %178 : vector<2x32xf32>
    %182 = arith.addf %180, %181 : vector<2x32xf32>
    %183 = math.tanh %182 : vector<2x32xf32>
    %184 = arith.mulf %179, %183 : vector<2x32xf32>
    %185 = vector.extract_strided_slice %16 {offsets = [0, 4], sizes = [2, 1], strides = [1, 1]} : vector<2x8xi1> to vector<2x1xi1>
    %186 = vector.shape_cast %185 : vector<2x1xi1> to vector<2x1xi1>
    %187 = vector.broadcast %186 : vector<2x1xi1> to vector<2x32xi1>
    %188 = arith.select %187, %184, %154 : vector<2x32xi1>, vector<2x32xf32>
    %189 = vector.shape_cast %185 : vector<2x1xi1> to vector<2x1xi1>
    %190 = vector.broadcast %189 : vector<2x1xi1> to vector<2x32xi1>
    %191 = arith.select %190, %182, %157 : vector<2x32xi1>, vector<2x32xf32>
    %192 = vector.extract_strided_slice %20 {offsets = [0, 4], sizes = [2, 1], strides = [1, 1]} : vector<2x8xi1> to vector<2x1xi1>
    %193 = vector.shape_cast %192 : vector<2x1xi1> to vector<2x1xi1>
    %194 = vector.broadcast %193 : vector<2x1xi1> to vector<2x32xi1>
    %195 = arith.select %194, %184, %161 : vector<2x32xi1>, vector<2x32xf32>
    %cst_30 = arith.constant 0.000000e+00 : f32
    %196 = vector.shape_cast %185 : vector<2x1xi1> to vector<2x1xi1>
    %197 = vector.broadcast %196 : vector<2x1xi1> to vector<2x32xi1>
    %198 = vector.broadcast %cst_30 : f32 to vector<2x32xf32>
    %199 = arith.select %197, %184, %198 : vector<2x32xi1>, vector<2x32xf32>
    %c0_31 = arith.constant 0 : index
    %c128 = arith.constant 128 : index
    %200 = vector.load %arg5[%c0_31, %c128] : memref<2x384xf32, #tpu.memory_space<vmem>>, vector<2x32xf32>
    tpu.vector_store %arg5[%c0_31, %c128], %199 {strides = array<i32>} : memref<2x384xf32, #tpu.memory_space<vmem>>, vector<2x32xf32>,
    %201 = vector.extract_strided_slice %27 {offsets = [0, 5, 0], sizes = [2, 1, 128], strides = [1, 1, 1]} : vector<2x8x128xf32> to vector<2x1x128xf32>
    %202 = vector.shape_cast %201 : vector<2x1x128xf32> to vector<2x128xf32>
    %cst_32 = arith.constant dense<0.000000e+00> : vector<2x128xf32>
    %203 = tpu.matmul %188, %0, %cst_32 {dimension_numbers = #tpu.dot_dimension_numbers<[1], [0], [0], [1], [0, 0, 1, 1], [], []>} : vector<2x32xf32>, vector<32x128xf32>, vector<2x128xf32> -> vector<2x128xf32>
    %204 = arith.addf %202, %203 : vector<2x128xf32>
    %205 = math.tanh %204 : vector<2x128xf32>
    %206 = vector.broadcast %10 : vector<1x128xf32> to vector<2x128xf32>
    %207 = arith.mulf %205, %206 : vector<2x128xf32>
    %208 = vector.broadcast %13 : vector<1x128xf32> to vector<2x128xf32>
    %209 = arith.addf %207, %208 : vector<2x128xf32>
    %210 = vector.extract_strided_slice %209 {offsets = [0, 0], sizes = [2, 32], strides = [1, 1]} : vector<2x128xf32> to vector<2x32xf32>
    %211 = vector.extract_strided_slice %209 {offsets = [0, 32], sizes = [2, 32], strides = [1, 1]} : vector<2x128xf32> to vector<2x32xf32>
    %212 = vector.extract_strided_slice %209 {offsets = [0, 64], sizes = [2, 32], strides = [1, 1]} : vector<2x128xf32> to vector<2x32xf32>
    %213 = vector.extract_strided_slice %209 {offsets = [0, 96], sizes = [2, 32], strides = [1, 1]} : vector<2x128xf32> to vector<2x32xf32>
    %214 = arith.mulf %211, %191 : vector<2x32xf32>
    %215 = arith.mulf %210, %212 : vector<2x32xf32>
    %216 = arith.addf %214, %215 : vector<2x32xf32>
    %217 = math.tanh %216 : vector<2x32xf32>
    %218 = arith.mulf %213, %217 : vector<2x32xf32>
    %219 = vector.extract_strided_slice %16 {offsets = [0, 5], sizes = [2, 1], strides = [1, 1]} : vector<2x8xi1> to vector<2x1xi1>
    %220 = vector.shape_cast %219 : vector<2x1xi1> to vector<2x1xi1>
    %221 = vector.broadcast %220 : vector<2x1xi1> to vector<2x32xi1>
    %222 = arith.select %221, %218, %188 : vector<2x32xi1>, vector<2x32xf32>
    %223 = vector.shape_cast %219 : vector<2x1xi1> to vector<2x1xi1>
    %224 = vector.broadcast %223 : vector<2x1xi1> to vector<2x32xi1>
    %225 = arith.select %224, %216, %191 : vector<2x32xi1>, vector<2x32xf32>
    %226 = vector.extract_strided_slice %20 {offsets = [0, 5], sizes = [2, 1], strides = [1, 1]} : vector<2x8xi1> to vector<2x1xi1>
    %227 = vector.shape_cast %226 : vector<2x1xi1> to vector<2x1xi1>
    %228 = vector.broadcast %227 : vector<2x1xi1> to vector<2x32xi1>
    %229 = arith.select %228, %218, %195 : vector<2x32xi1>, vector<2x32xf32>
    %cst_33 = arith.constant 0.000000e+00 : f32
    %230 = vector.shape_cast %219 : vector<2x1xi1> to vector<2x1xi1>
    %231 = vector.broadcast %230 : vector<2x1xi1> to vector<2x32xi1>
    %232 = vector.broadcast %cst_33 : f32 to vector<2x32xf32>
    %233 = arith.select %231, %218, %232 : vector<2x32xi1>, vector<2x32xf32>
    %c0_34 = arith.constant 0 : index
    %c160 = arith.constant 160 : index
    %234 = vector.load %arg5[%c0_34, %c160] : memref<2x384xf32, #tpu.memory_space<vmem>>, vector<2x32xf32>
    tpu.vector_store %arg5[%c0_34, %c160], %233 {strides = array<i32>} : memref<2x384xf32, #tpu.memory_space<vmem>>, vector<2x32xf32>,
    %235 = vector.extract_strided_slice %27 {offsets = [0, 6, 0], sizes = [2, 1, 128], strides = [1, 1, 1]} : vector<2x8x128xf32> to vector<2x1x128xf32>
    %236 = vector.shape_cast %235 : vector<2x1x128xf32> to vector<2x128xf32>
    %cst_35 = arith.constant dense<0.000000e+00> : vector<2x128xf32>
    %237 = tpu.matmul %222, %0, %cst_35 {dimension_numbers = #tpu.dot_dimension_numbers<[1], [0], [0], [1], [0, 0, 1, 1], [], []>} : vector<2x32xf32>, vector<32x128xf32>, vector<2x128xf32> -> vector<2x128xf32>
    %238 = arith.addf %236, %237 : vector<2x128xf32>
    %239 = math.tanh %238 : vector<2x128xf32>
    %240 = vector.broadcast %10 : vector<1x128xf32> to vector<2x128xf32>
    %241 = arith.mulf %239, %240 : vector<2x128xf32>
    %242 = vector.broadcast %13 : vector<1x128xf32> to vector<2x128xf32>
    %243 = arith.addf %241, %242 : vector<2x128xf32>
    %244 = vector.extract_strided_slice %243 {offsets = [0, 0], sizes = [2, 32], strides = [1, 1]} : vector<2x128xf32> to vector<2x32xf32>
    %245 = vector.extract_strided_slice %243 {offsets = [0, 32], sizes = [2, 32], strides = [1, 1]} : vector<2x128xf32> to vector<2x32xf32>
    %246 = vector.extract_strided_slice %243 {offsets = [0, 64], sizes = [2, 32], strides = [1, 1]} : vector<2x128xf32> to vector<2x32xf32>
    %247 = vector.extract_strided_slice %243 {offsets = [0, 96], sizes = [2, 32], strides = [1, 1]} : vector<2x128xf32> to vector<2x32xf32>
    %248 = arith.mulf %245, %225 : vector<2x32xf32>
    %249 = arith.mulf %244, %246 : vector<2x32xf32>
    %250 = arith.addf %248, %249 : vector<2x32xf32>
    %251 = math.tanh %250 : vector<2x32xf32>
    %252 = arith.mulf %247, %251 : vector<2x32xf32>
    %253 = vector.extract_strided_slice %16 {offsets = [0, 6], sizes = [2, 1], strides = [1, 1]} : vector<2x8xi1> to vector<2x1xi1>
    %254 = vector.shape_cast %253 : vector<2x1xi1> to vector<2x1xi1>
    %255 = vector.broadcast %254 : vector<2x1xi1> to vector<2x32xi1>
    %256 = arith.select %255, %252, %222 : vector<2x32xi1>, vector<2x32xf32>
    %257 = vector.shape_cast %253 : vector<2x1xi1> to vector<2x1xi1>
    %258 = vector.broadcast %257 : vector<2x1xi1> to vector<2x32xi1>
    %259 = arith.select %258, %250, %225 : vector<2x32xi1>, vector<2x32xf32>
    %260 = vector.extract_strided_slice %20 {offsets = [0, 6], sizes = [2, 1], strides = [1, 1]} : vector<2x8xi1> to vector<2x1xi1>
    %261 = vector.shape_cast %260 : vector<2x1xi1> to vector<2x1xi1>
    %262 = vector.broadcast %261 : vector<2x1xi1> to vector<2x32xi1>
    %263 = arith.select %262, %252, %229 : vector<2x32xi1>, vector<2x32xf32>
    %cst_36 = arith.constant 0.000000e+00 : f32
    %264 = vector.shape_cast %253 : vector<2x1xi1> to vector<2x1xi1>
    %265 = vector.broadcast %264 : vector<2x1xi1> to vector<2x32xi1>
    %266 = vector.broadcast %cst_36 : f32 to vector<2x32xf32>
    %267 = arith.select %265, %252, %266 : vector<2x32xi1>, vector<2x32xf32>
    %c0_37 = arith.constant 0 : index
    %c192 = arith.constant 192 : index
    %268 = vector.load %arg5[%c0_37, %c192] : memref<2x384xf32, #tpu.memory_space<vmem>>, vector<2x32xf32>
    tpu.vector_store %arg5[%c0_37, %c192], %267 {strides = array<i32>} : memref<2x384xf32, #tpu.memory_space<vmem>>, vector<2x32xf32>,
    %269 = vector.extract_strided_slice %27 {offsets = [0, 7, 0], sizes = [2, 1, 128], strides = [1, 1, 1]} : vector<2x8x128xf32> to vector<2x1x128xf32>
    %270 = vector.shape_cast %269 : vector<2x1x128xf32> to vector<2x128xf32>
    %cst_38 = arith.constant dense<0.000000e+00> : vector<2x128xf32>
    %271 = tpu.matmul %256, %0, %cst_38 {dimension_numbers = #tpu.dot_dimension_numbers<[1], [0], [0], [1], [0, 0, 1, 1], [], []>} : vector<2x32xf32>, vector<32x128xf32>, vector<2x128xf32> -> vector<2x128xf32>
    %272 = arith.addf %270, %271 : vector<2x128xf32>
    %273 = math.tanh %272 : vector<2x128xf32>
    %274 = vector.broadcast %10 : vector<1x128xf32> to vector<2x128xf32>
    %275 = arith.mulf %273, %274 : vector<2x128xf32>
    %276 = vector.broadcast %13 : vector<1x128xf32> to vector<2x128xf32>
    %277 = arith.addf %275, %276 : vector<2x128xf32>
    %278 = vector.extract_strided_slice %277 {offsets = [0, 0], sizes = [2, 32], strides = [1, 1]} : vector<2x128xf32> to vector<2x32xf32>
    %279 = vector.extract_strided_slice %277 {offsets = [0, 32], sizes = [2, 32], strides = [1, 1]} : vector<2x128xf32> to vector<2x32xf32>
    %280 = vector.extract_strided_slice %277 {offsets = [0, 64], sizes = [2, 32], strides = [1, 1]} : vector<2x128xf32> to vector<2x32xf32>
    %281 = vector.extract_strided_slice %277 {offsets = [0, 96], sizes = [2, 32], strides = [1, 1]} : vector<2x128xf32> to vector<2x32xf32>
    %282 = arith.mulf %279, %259 : vector<2x32xf32>
    %283 = arith.mulf %278, %280 : vector<2x32xf32>
    %284 = arith.addf %282, %283 : vector<2x32xf32>
    %285 = math.tanh %284 : vector<2x32xf32>
    %286 = arith.mulf %281, %285 : vector<2x32xf32>
    %287 = vector.extract_strided_slice %16 {offsets = [0, 7], sizes = [2, 1], strides = [1, 1]} : vector<2x8xi1> to vector<2x1xi1>
    %288 = vector.shape_cast %287 : vector<2x1xi1> to vector<2x1xi1>
    %289 = vector.broadcast %288 : vector<2x1xi1> to vector<2x32xi1>
    %290 = arith.select %289, %286, %256 : vector<2x32xi1>, vector<2x32xf32>
    %291 = vector.shape_cast %287 : vector<2x1xi1> to vector<2x1xi1>
    %292 = vector.broadcast %291 : vector<2x1xi1> to vector<2x32xi1>
    %293 = arith.select %292, %284, %259 : vector<2x32xi1>, vector<2x32xf32>
    %294 = vector.extract_strided_slice %20 {offsets = [0, 7], sizes = [2, 1], strides = [1, 1]} : vector<2x8xi1> to vector<2x1xi1>
    %295 = vector.shape_cast %294 : vector<2x1xi1> to vector<2x1xi1>
    %296 = vector.broadcast %295 : vector<2x1xi1> to vector<2x32xi1>
    %297 = arith.select %296, %286, %263 : vector<2x32xi1>, vector<2x32xf32>
    %cst_39 = arith.constant 0.000000e+00 : f32
    %298 = vector.shape_cast %287 : vector<2x1xi1> to vector<2x1xi1>
    %299 = vector.broadcast %298 : vector<2x1xi1> to vector<2x32xi1>
    %300 = vector.broadcast %cst_39 : f32 to vector<2x32xf32>
    %301 = arith.select %299, %286, %300 : vector<2x32xi1>, vector<2x32xf32>
    %c0_40 = arith.constant 0 : index
    %c224 = arith.constant 224 : index
    %302 = vector.load %arg5[%c0_40, %c224] : memref<2x384xf32, #tpu.memory_space<vmem>>, vector<2x32xf32>
    tpu.vector_store %arg5[%c0_40, %c224], %301 {strides = array<i32>} : memref<2x384xf32, #tpu.memory_space<vmem>>, vector<2x32xf32>,
    %cst_41 = arith.constant 0.000000e+00 : f32
    %303 = vector.broadcast %cst_41 : f32 to vector<2x32xf32>
    %304 = tpu.concatenate %290, %293, %297, %303 in 1 : vector<2x32xf32>, vector<2x32xf32>, vector<2x32xf32>, vector<2x32xf32> -> vector<2x128xf32>
    %c0_42 = arith.constant 0 : index
    %c256 = arith.constant 256 : index
    %305 = vector.load %arg5[%c0_42, %c256] : memref<2x384xf32, #tpu.memory_space<vmem>>, vector<2x128xf32>
    tpu.vector_store %arg5[%c0_42, %c256], %304 {strides = array<i32>} : memref<2x384xf32, #tpu.memory_space<vmem>>, vector<2x128xf32>,
    return
  }
}

</mosaic_0001>

<llo_original>
// kernel: encoder_forward.1
$region0: #{encoder_forward.1}
  #allocation0 [shape = 'u32[]', space=smem, size = 0x4, offset = 0x4, fixed_abs, tag = 'smem constant byte address 0x4 - core index']
  #allocation1 [shape = 'u32[144,128]{1,0:T(1,128)}', space=vmem, size = 0x12000, scoped, tag = 'internal scratch']
  %s0 = inlined_call_operand.hbm [shape: f32[16,16], index: 0, kind: input, shape index: {}]
  %s1 = inlined_call_operand.vmem [shape: s32[2,1], index: 1, kind: input, shape index: {}]
  %s2 = inlined_call_operand.hbm [shape: f32[16,128], index: 2, kind: input, shape index: {}]
  %s3 = inlined_call_operand.hbm [shape: f32[32,128], index: 3, kind: input, shape index: {}]
  %s4 = inlined_call_operand.vmem [shape: f32[1,128], index: 4, kind: input, shape index: {}]
  %s5 = inlined_call_operand.vmem [shape: f32[2,384], index: 5, kind: output, shape index: {}]
  %s6 = sld [smem:[#allocation0]]
  $region42: #{encoder_forward.1} parent=0
    _
  %s8 = ssub.s32 1, %s6
  %s9 = scalar_select 0, %s8, %s6
  $region1: #{encoder_forward.1} parent=0
    #allocation2 [shape = 'u8[8192]{0}', space=vmem, size = 0x2000, scoped, tag = 'input window, operand 0, single buffered']
    #allocation3 [shape = 's32[1]{0}', space=sflag, size = 0x4, scoped, tag = 'scoped memory for encoder_forward.1']
    #allocation4 [shape = 'u8[8192]{0}', space=vmem, size = 0x2000, scoped, tag = 'input window, operand 2, single buffered']
    #allocation5 [shape = 's32[1]{0}', space=sflag, size = 0x4, scoped, tag = 'scoped memory for encoder_forward.1']
    #allocation6 [shape = 'u8[16384]{0}', space=vmem, size = 0x4000, scoped, tag = 'input window, operand 3, single buffered']
    %10 = vsyncpa [#allocation3], 0
    %11 = vsyncpa [#allocation5], 0
    // Predicated region
    $region2: #{encoder_forward.1} parent=1 // pred_check
      _
    $region3: #{encoder_forward.1} parent=1 // pred_check_branch
      %13 = sbr.rel (0) target = $region5
    $region4: #{encoder_forward.1} parent=1 // pred_region
      %s15 = ssub.s32 256, 256
      %16 = vsyncadd [#allocation3], %s15
      %s17 = sshll.u32 [#allocation2], 4
      %s18 = int_to_ptr.vmem [resolvable:$true] %s17
      %23 = dma.hbm_to_vmem [thread:$0]  %s0, 256, %s18, [#allocation3], 128, 128, 8
    $region5: #{encoder_forward.1} parent=1 // pred_fallthru
      _
    // Predicated region
    $region6: #{encoder_forward.1} parent=1 // pred_check
      _
    $region7: #{encoder_forward.1} parent=1 // pred_check_branch
      %25 = sbr.rel (0) target = $region9
    $region8: #{encoder_forward.1} parent=1 // pred_region
      _
    $region9: #{encoder_forward.1} parent=1 // pred_fallthru
      _
    // Predicated region
    $region10: #{encoder_forward.1} parent=1 // pred_check
      _
    $region11: #{encoder_forward.1} parent=1 // pred_check_branch
      %27 = sbr.rel (0) target = $region13
    $region12: #{encoder_forward.1} parent=1 // pred_region
      %s29 = ssub.s32 256, 256
      %30 = vsyncadd [#allocation5], %s29
      %s31 = sshll.u32 [#allocation4], 4
      %s32 = int_to_ptr.vmem [resolvable:$true] %s31
      %37 = dma.hbm_to_vmem [thread:$0]  %s2, 256, %s32, [#allocation5], 128, 128, 8
    $region13: #{encoder_forward.1} parent=1 // pred_fallthru
      _
    // Predicated region
    $region14: #{encoder_forward.1} parent=1 // pred_check
      _
    $region15: #{encoder_forward.1} parent=1 // pred_check_branch
      %39 = sbr.rel (0) target = $region17
    $region16: #{encoder_forward.1} parent=1 // pred_region
      %s41 = ssub.s32 512, 512
      %42 = vsyncadd [#allocation5], %s41
      %s43 = sshll.u32 [#allocation6], 4
      %s44 = int_to_ptr.vmem [resolvable:$true] %s43
      %49 = dma.hbm_to_vmem [thread:$0]  %s3, 512, %s44, [#allocation5], 128, 128, 8
    $region17: #{encoder_forward.1} parent=1 // pred_fallthru
      _
    // Predicated region
    $region18: #{encoder_forward.1} parent=1 // pred_check
      _
    $region19: #{encoder_forward.1} parent=1 // pred_check_branch
      %51 = sbr.rel (0) target = $region21
    $region20: #{encoder_forward.1} parent=1 // pred_region
      _
    $region21: #{encoder_forward.1} parent=1 // pred_fallthru
      _
    // Predicated region
    $region22: #{encoder_forward.1} parent=1 // pred_check
      _
    $region23: #{encoder_forward.1} parent=1 // pred_check_branch
      %53 = sbr.rel (0) target = $region25
    $region24: #{encoder_forward.1} parent=1 // pred_region
      %54 = dma.done [#allocation3], 256
    $region25: #{encoder_forward.1} parent=1 // pred_fallthru
      _
    // Predicated region
    $region26: #{encoder_forward.1} parent=1 // pred_check
      _
    $region27: #{encoder_forward.1} parent=1 // pred_check_branch
      %56 = sbr.rel (0) target = $region29
    $region28: #{encoder_forward.1} parent=1 // pred_region
      %57 = dma.done [#allocation5], 256
    $region29: #{encoder_forward.1} parent=1 // pred_fallthru
      _
    // Predicated region
    $region30: #{encoder_forward.1} parent=1 // pred_check
      _
    $region31: #{encoder_forward.1} parent=1 // pred_check_branch
      %59 = sbr.rel (0) target = $region33
    $region32: #{encoder_forward.1} parent=1 // pred_region
      %60 = dma.done [#allocation5], 512
    $region33: #{encoder_forward.1} parent=1 // pred_fallthru
      _
    %v61 = vld [vmem:[#allocation6] sm:$0xff]
    %v62 = vld [vmem:[#allocation6 + $0x8] sm:$0xff]
    %v63 = vld [vmem:[#allocation6 + $0x10] sm:$0xff]
    %v64 = vld [vmem:[#allocation6 + $0x18] sm:$0xff]
    %v65 = vld [vmem:[%s1] sm:$0x3]
    %v66 = vlaneseq
    %v67 = vand.u32 %v66, 127
    %vm68 = vcmp.ge.s32.totalorder %v67, 64
    %vm69 = vcmp.lt.s32.totalorder %v67, 96
    %vm70 = vmand %vm68, %vm69
    %v71 = vsel %vm70, 1.0, 0.5
    %v72 = vsel %vm70, 0.0, 0.5
    %73 = vset.pattern.permute.xlu0 0
    %74 = vperm.xlu0 %73, %v65
    %v75 = vpop.permute.xlu0 %74
    %vm76 = vcmp.lt.s32.totalorder %v67, %v75
    %v77 = vsub.s32 %v65, 1
    %78 = vset.pattern.permute.xlu0 0
    %79 = vperm.xlu0 %78, %v77
    %v80 = vpop.permute.xlu0 %79
    %vm81 = vcmp.eq.s32.totalorder %v67, %v80
    %v82 = vld [vmem:[#allocation2] sm:$0xff]
    %v83 = vld [vmem:[#allocation2 + $0x8] sm:$0xff]
    %v84 = vld [vmem:[#allocation4] sm:$0xff]
    %v85 = vld [vmem:[#allocation4 + $0x8] sm:$0xff]
    %v86 = vld [vmem:[%s4] sm:$0x1]
    %v88 = vlaneseq
    %v89 = vshrl.u32 %v88, 7
    %v90 = vsub.s32 0, %v89
    %v91 = vrot.slane %v86, %v90
    %vm93 = vcmask 130048
    %v95 = vsel %vm93, %v82, 0
    %v98 = vsel %vm93, %v83, 0
    %100 = vmatprep.subr.mxu0 0.0
    %101 = vmatpush1.msra.mxu0 0.0
    %102 = vmatprep.subr.mxu0 0.0
    %103 = vmatpush1.msra.mxu0 0.0
    %104 = vmatprep.subr.mxu0 0.0
    %105 = vmatpush1.msra.mxu0 0.0
    %106 = vmatprep.subr.mxu0 0.0
    %107 = vmatpush1.msra.mxu0 0.0
    %108 = vmatprep.subr.mxu0 0.0
    %109 = vmatpush1.msra.mxu0 0.0
    %110 = vmatprep.subr.mxu0 0.0
    %111 = vmatpush1.msra.mxu0 0.0
    %112 = vmatprep.subr.mxu0 0.0
    %113 = vmatpush1.msra.mxu0 0.0
    %114 = vmatprep.subr.mxu0 0.0
    %115 = vmatpush1.msra.mxu0 0.0
    %116 = vmatprep.subr.mxu0 0.0
    %117 = vmatpush1.msra.mxu0 0.0
    %118 = vmatprep.subr.mxu0 0.0
    %119 = vmatpush1.msra.mxu0 0.0
    %120 = vmatprep.subr.mxu0 0.0
    %121 = vmatpush1.msra.mxu0 0.0
    %122 = vmatprep.subr.mxu0 0.0
    %123 = vmatpush1.msra.mxu0 0.0
    %124 = vmatprep.subr.mxu0 0.0
    %125 = vmatpush1.msra.mxu0 0.0
    %126 = vmatprep.subr.mxu0 0.0
    %127 = vmatpush1.msra.mxu0 0.0
    %128 = vmatprep.subr.mxu0 0.0
    %129 = vmatpush1.msra.mxu0 %v85
    %130 = vmatprep.subr.mxu0 0.0
    %131 = vmatpush1.msra.mxu0 %v84
    %132 = vmatprep.subr.mxu0 0.0
    %133 = vmatpush2.msra.mxu0 0.0
    %134 = vmatprep.subr.mxu0 0.0
    %135 = vmatpush2.msra.mxu0 0.0
    %136 = vmatprep.subr.mxu0 0.0
    %137 = vmatpush2.msra.mxu0 0.0
    %138 = vmatprep.subr.mxu0 0.0
    %139 = vmatpush2.msra.mxu0 0.0
    %140 = vmatprep.subr.mxu0 0.0
    %141 = vmatpush2.msra.mxu0 0.0
    %142 = vmatprep.subr.mxu0 0.0
    %143 = vmatpush2.msra.mxu0 0.0
    %144 = vmatprep.subr.mxu0 0.0
    %145 = vmatpush2.msra.mxu0 0.0
    %146 = vmatprep.subr.mxu0 0.0
    %147 = vmatpush2.msra.mxu0 0.0
    %148 = vmatprep.subr.mxu0 0.0
    %149 = vmatpush2.msra.mxu0 0.0
    %150 = vmatprep.subr.mxu0 0.0
    %151 = vmatpush2.msra.mxu0 0.0
    %152 = vmatprep.subr.mxu0 0.0
    %153 = vmatpush2.msra.mxu0 0.0
    %154 = vmatprep.subr.mxu0 0.0
    %155 = vmatpush2.msra.mxu0 0.0
    %156 = vmatprep.subr.mxu0 0.0
    %157 = vmatpush2.msra.mxu0 0.0
    %158 = vmatprep.subr.mxu0 0.0
    %159 = vmatpush2.msra.mxu0 0.0
    %160 = vmatprep.subr.mxu0 0.0
    %161 = vmatpush2.msra.mxu0 0.0
    %162 = vmatprep.subr.mxu0 0.0
    %163 = vmatpush2.msra.mxu0 0.0
    %164 = vmatprep.mubr.f32.mxu0 0.0
    %165 = vmatmul.mubr.f32.gmra.mxu0 %v95
    %v166 = vpop.f32.mrf.mxu0
    %v167 = vadd.f32 %v91, %v166
    %v168 = vpop.f32.mrf.mxu0
    %169 = vmatprep.mubr.f32.mxu0 0.0
    %170 = vmatmul.mubr.f32.gmra.mxu0 %v98
    %v171 = vpop.f32.mrf.mxu0
    %v172 = vadd.f32 %v91, %v171
    %v173 = vpop.f32.mrf.mxu0
    %174 = vdwg.mxu0
    %vm175 = vcmask 261120
    %v177 = vsel %vm175, 0.0, 0
    %179 = vmatprep.subr.mxu0 0.0
    %180 = vmatpush1.msra.mxu0 0.0
    %181 = vmatprep.subr.mxu0 0.0
    %182 = vmatpush1.msra.mxu0 0.0
    %183 = vmatprep.subr.mxu0 0.0
    %184 = vmatpush1.msra.mxu0 0.0
    %185 = vmatprep.subr.mxu0 0.0
    %186 = vmatpush1.msra.mxu0 0.0
    %187 = vmatprep.subr.mxu0 0.0
    %188 = vmatpush1.msra.mxu0 0.0
    %189 = vmatprep.subr.mxu0 0.0
    %190 = vmatpush1.msra.mxu0 0.0
    %191 = vmatprep.subr.mxu0 0.0
    %192 = vmatpush1.msra.mxu0 0.0
    %193 = vmatprep.subr.mxu0 0.0
    %194 = vmatpush1.msra.mxu0 0.0
    %195 = vmatprep.subr.mxu0 0.0
    %196 = vmatpush1.msra.mxu0 0.0
    %197 = vmatprep.subr.mxu0 0.0
    %198 = vmatpush1.msra.mxu0 0.0
    %199 = vmatprep.subr.mxu0 0.0
    %200 = vmatpush1.msra.mxu0 0.0
    %201 = vmatprep.subr.mxu0 0.0
    %202 = vmatpush1.msra.mxu0 0.0
    %203 = vmatprep.subr.mxu0 0.0
    %204 = vmatpush1.msra.mxu0 %v64
    %205 = vmatprep.subr.mxu0 0.0
    %206 = vmatpush1.msra.mxu0 %v63
    %207 = vmatprep.subr.mxu0 0.0
    %208 = vmatpush1.msra.mxu0 %v62
    %209 = vmatprep.subr.mxu0 0.0
    %210 = vmatpush1.msra.mxu0 %v61
    %211 = vmatprep.subr.mxu0 0.0
    %212 = vmatpush2.msra.mxu0 0.0
    %213 = vmatprep.subr.mxu0 0.0
    %214 = vmatpush2.msra.mxu0 0.0
    %215 = vmatprep.subr.mxu0 0.0
    %216 = vmatpush2.msra.mxu0 0.0
    %217 = vmatprep.subr.mxu0 0.0
    %218 = vmatpush2.msra.mxu0 0.0
    %219 = vmatprep.subr.mxu0 0.0
    %220 = vmatpush2.msra.mxu0 0.0
    %221 = vmatprep.subr.mxu0 0.0
    %222 = vmatpush2.msra.mxu0 0.0
    %223 = vmatprep.subr.mxu0 0.0
    %224 = vmatpush2.msra.mxu0 0.0
    %225 = vmatprep.subr.mxu0 0.0
    %226 = vmatpush2.msra.mxu0 0.0
    %227 = vmatprep.subr.mxu0 0.0
    %228 = vmatpush2.msra.mxu0 0.0
    %229 = vmatprep.subr.mxu0 0.0
    %230 = vmatpush2.msra.mxu0 0.0
    %231 = vmatprep.subr.mxu0 0.0
    %232 = vmatpush2.msra.mxu0 0.0
    %233 = vmatprep.subr.mxu0 0.0
    %234 = vmatpush2.msra.mxu0 0.0
    %235 = vmatprep.subr.mxu0 0.0
    %236 = vmatpush2.msra.mxu0 0.0
    %237 = vmatprep.subr.mxu0 0.0
    %238 = vmatpush2.msra.mxu0 0.0
    %239 = vmatprep.subr.mxu0 0.0
    %240 = vmatpush2.msra.mxu0 0.0
    %241 = vmatprep.subr.mxu0 0.0
    %242 = vmatpush2.msra.mxu0 0.0
    %243 = vmatprep.mubr.f32.mxu0 0.0
    %244 = vmatmul.mubr.f32.gmra.mxu0 %v177
    %v245 = vpop.f32.mrf.mxu0
    %v246 = vadd.f32 0.0, %v245
    %v247 = vpop.f32.mrf.mxu0
    %248 = vdwg.mxu0
    %v250 = vrot.slane %v246, 1
    %v253 = vadd.f32 %v167, %v246
    %v254 = vadd.f32 %v172, %v250
    %v255 = vtanh.pop %v253
    %v256 = vtanh.pop %v254
    %v257 = vmul.f32 %v255, %v71
    %v258 = vmul.f32 %v256, %v71
    %v259 = vadd.f32 %v257, %v72
    %v260 = vadd.f32 %v258, %v72
    %v261 = vmul.f32 %v259, 0.0
    %v262 = vmul.f32 %v260, 0.0
    %265 = vrot.lane.b32.xlu0 %v259, 64
    %v266 = vpop.permute.xlu0 %265
    %267 = vrot.lane.b32.xlu0 %v260, 64
    %v268 = vpop.permute.xlu0 %267
    %v271 = vmul.f32 %v259, %v266
    %v272 = vmul.f32 %v260, %v268
    %275 = vrot.lane.b32.xlu0 %v271, 32
    %v276 = vpop.permute.xlu0 %275
    %277 = vrot.lane.b32.xlu0 %v272, 32
    %v278 = vpop.permute.xlu0 %277
    %v281 = vadd.f32 %v261, %v276
    %v282 = vadd.f32 %v262, %v278
    %v283 = vtanh.pop %v281
    %v284 = vtanh.pop %v282
    %287 = vrot.lane.b32.xlu0 %v283, 64
    %v288 = vpop.permute.xlu0 %287
    %289 = vrot.lane.b32.xlu0 %v284, 64
    %v290 = vpop.permute.xlu0 %289
    %v293 = vmul.f32 %v259, %v288
    %v294 = vmul.f32 %v260, %v290
    %v295 = vsel %vm76, 1, 0
    %296 = vset.pattern.permute.xlu0 0
    %297 = vperm.xlu0 %296, %v295
    %v298 = vpop.permute.xlu0 %297
    %vm299 = vcmp.eq.s32.totalorder %v298, 1
    %v302 = vrot.slane %v294, 7
    %vm303 = vcmask 1041409
    %v304 = vsel %vm303, %v302, %v293
    %305 = vrot.lane.b32.xlu0 %v304, 32
    %v306 = vpop.permute.xlu0 %305
    %v308 = vsel %vm299, %v306, 0.0
    %v311 = vrot.slane %v282, 7
    %v312 = vsel %vm303, %v311, %v281
    %313 = vrot.lane.b32.xlu0 %v312, 96
    %v314 = vpop.permute.xlu0 %313
    %v316 = vsel %vm299, %v314, 0.0
    %v317 = vsel %vm81, 1, 0
    %318 = vset.pattern.permute.xlu0 0
    %319 = vperm.xlu0 %318, %v317
    %v320 = vpop.permute.xlu0 %319
    %vm321 = vcmp.eq.s32.totalorder %v320, 1
    %v322 = vsel %vm321, %v306, 0.0
    %vm323 = vcmask 254976
    %324 = vst.msk [vmem:[%s5] sm:$0x3] %vm323, %v308
    %v326 = vsel %vm175, %v308, 0
    %328 = vmatprep.subr.mxu0 0.0
    %329 = vmatpush1.msra.mxu0 0.0
    %330 = vmatprep.subr.mxu0 0.0
    %331 = vmatpush1.msra.mxu0 0.0
    %332 = vmatprep.subr.mxu0 0.0
    %333 = vmatpush1.msra.mxu0 0.0
    %334 = vmatprep.subr.mxu0 0.0
    %335 = vmatpush1.msra.mxu0 0.0
    %336 = vmatprep.subr.mxu0 0.0
    %337 = vmatpush1.msra.mxu0 0.0
    %338 = vmatprep.subr.mxu0 0.0
    %339 = vmatpush1.msra.mxu0 0.0
    %340 = vmatprep.subr.mxu0 0.0
    %341 = vmatpush1.msra.mxu0 0.0
    %342 = vmatprep.subr.mxu0 0.0
    %343 = vmatpush1.msra.mxu0 0.0
    %344 = vmatprep.subr.mxu0 0.0
    %345 = vmatpush1.msra.mxu0 0.0
    %346 = vmatprep.subr.mxu0 0.0
    %347 = vmatpush1.msra.mxu0 0.0
    %348 = vmatprep.subr.mxu0 0.0
    %349 = vmatpush1.msra.mxu0 0.0
    %350 = vmatprep.subr.mxu0 0.0
    %351 = vmatpush1.msra.mxu0 0.0
    %352 = vmatprep.subr.mxu0 0.0
    %353 = vmatpush1.msra.mxu0 %v64
    %354 = vmatprep.subr.mxu0 0.0
    %355 = vmatpush1.msra.mxu0 %v63
    %356 = vmatprep.subr.mxu0 0.0
    %357 = vmatpush1.msra.mxu0 %v62
    %358 = vmatprep.subr.mxu0 0.0
    %359 = vmatpush1.msra.mxu0 %v61
    %360 = vmatprep.subr.mxu0 0.0
    %361 = vmatpush2.msra.mxu0 0.0
    %362 = vmatprep.subr.mxu0 0.0
    %363 = vmatpush2.msra.mxu0 0.0
    %364 = vmatprep.subr.mxu0 0.0
    %365 = vmatpush2.msra.mxu0 0.0
    %366 = vmatprep.subr.mxu0 0.0
    %367 = vmatpush2.msra.mxu0 0.0
    %368 = vmatprep.subr.mxu0 0.0
    %369 = vmatpush2.msra.mxu0 0.0
    %370 = vmatprep.subr.mxu0 0.0
    %371 = vmatpush2.msra.mxu0 0.0
    %372 = vmatprep.subr.mxu0 0.0
    %373 = vmatpush2.msra.mxu0 0.0
    %374 = vmatprep.subr.mxu0 0.0
    %375 = vmatpush2.msra.mxu0 0.0
    %376 = vmatprep.subr.mxu0 0.0
    %377 = vmatpush2.msra.mxu0 0.0
    %378 = vmatprep.subr.mxu0 0.0
    %379 = vmatpush2.msra.mxu0 0.0
    %380 = vmatprep.subr.mxu0 0.0
    %381 = vmatpush2.msra.mxu0 0.0
    %382 = vmatprep.subr.mxu0 0.0
    %383 = vmatpush2.msra.mxu0 0.0
    %384 = vmatprep.subr.mxu0 0.0
    %385 = vmatpush2.msra.mxu0 0.0
    %386 = vmatprep.subr.mxu0 0.0
    %387 = vmatpush2.msra.mxu0 0.0
    %388 = vmatprep.subr.mxu0 0.0
    %389 = vmatpush2.msra.mxu0 0.0
    %390 = vmatprep.subr.mxu0 0.0
    %391 = vmatpush2.msra.mxu0 0.0
    %392 = vmatprep.mubr.f32.mxu0 0.0
    %393 = vmatmul.mubr.f32.gmra.mxu0 %v326
    %v394 = vpop.f32.mrf.mxu0
    %v395 = vadd.f32 0.0, %v394
    %v396 = vpop.f32.mrf.mxu0
    %397 = vdwg.mxu0
    %v399 = vrot.slane %v395, 7
    %v402 = vadd.f32 %v167, %v399
    %v403 = vadd.f32 %v172, %v395
    %v404 = vtanh.pop %v402
    %v405 = vtanh.pop %v403
    %v406 = vmul.f32 %v404, %v71
    %v407 = vmul.f32 %v405, %v71
    %v408 = vadd.f32 %v406, %v72
    %v409 = vadd.f32 %v407, %v72
    %v411 = vrot.slane %v316, 7
    %412 = vrot.lane.b32.xlu0 %v411, 32
    %v413 = vpop.permute.xlu0 %412
    %414 = vrot.lane.b32.xlu0 %v316, 32
    %v415 = vpop.permute.xlu0 %414
    %v418 = vmul.f32 %v408, %v413
    %v419 = vmul.f32 %v409, %v415
    %422 = vrot.lane.b32.xlu0 %v408, 64
    %v423 = vpop.permute.xlu0 %422
    %424 = vrot.lane.b32.xlu0 %v409, 64
    %v425 = vpop.permute.xlu0 %424
    %v428 = vmul.f32 %v408, %v423
    %v429 = vmul.f32 %v409, %v425
    %432 = vrot.lane.b32.xlu0 %v428, 32
    %v433 = vpop.permute.xlu0 %432
    %434 = vrot.lane.b32.xlu0 %v429, 32
    %v435 = vpop.permute.xlu0 %434
    %v438 = vadd.f32 %v418, %v433
    %v439 = vadd.f32 %v419, %v435
    %v440 = vtanh.pop %v438
    %v441 = vtanh.pop %v439
    %444 = vrot.lane.b32.xlu0 %v440, 64
    %v445 = vpop.permute.xlu0 %444
    %446 = vrot.lane.b32.xlu0 %v441, 64
    %v447 = vpop.permute.xlu0 %446
    %v450 = vmul.f32 %v408, %v445
    %v451 = vmul.f32 %v409, %v447
    %452 = vset.pattern.permute.xlu0 1
    %453 = vperm.xlu0 %452, %v295
    %v454 = vpop.permute.xlu0 %453
    %vm455 = vcmp.eq.s32.totalorder %v454, 1
    %v458 = vrot.slane %v450, 1
    %v459 = vsel %vm303, %v451, %v458
    %460 = vrot.lane.b32.xlu0 %v459, 32
    %v461 = vpop.permute.xlu0 %460
    %v463 = vsel %vm455, %v461, %v308
    %v466 = vrot.slane %v438, 1
    %v467 = vsel %vm303, %v439, %v466
    %468 = vrot.lane.b32.xlu0 %v467, 96
    %v469 = vpop.permute.xlu0 %468
    %v471 = vsel %vm455, %v469, %v316
    %472 = vset.pattern.permute.xlu0 1
    %473 = vperm.xlu0 %472, %v317
    %v474 = vpop.permute.xlu0 %473
    %vm475 = vcmp.eq.s32.totalorder %v474, 1
    %v476 = vsel %vm475, %v461, %v322
    %v477 = vsel %vm455, %v461, 0.0
    %v480 = vunpack.c.l.s4 1983009808
    %v481 = vunpack.c.0.s8 %v480
    %v482 = vlaneseq
    %v483 = vshrl.u32 %v482, 7
    %v484 = vsub.s32 %v481, %v483
    %v485 = vrot.slane %v477, %v484
    %486 = vrot.lane.b32.xlu0 %v485, 32
    %v487 = vpop.permute.xlu0 %486
    %vm489 = vcmask 517376
    %490 = vst.msk [vmem:[%s5] sm:$0x3] %vm489, %v487
    %v492 = vsel %vm175, %v463, 0
    %494 = vmatprep.subr.mxu0 0.0
    %495 = vmatpush1.msra.mxu0 0.0
    %496 = vmatprep.subr.mxu0 0.0
    %497 = vmatpush1.msra.mxu0 0.0
    %498 = vmatprep.subr.mxu0 0.0
    %499 = vmatpush1.msra.mxu0 0.0
    %500 = vmatprep.subr.mxu0 0.0
    %501 = vmatpush1.msra.mxu0 0.0
    %502 = vmatprep.subr.mxu0 0.0
    %503 = vmatpush1.msra.mxu0 0.0
    %504 = vmatprep.subr.mxu0 0.0
    %505 = vmatpush1.msra.mxu0 0.0
    %506 = vmatprep.subr.mxu0 0.0
    %507 = vmatpush1.msra.mxu0 0.0
    %508 = vmatprep.subr.mxu0 0.0
    %509 = vmatpush1.msra.mxu0 0.0
    %510 = vmatprep.subr.mxu0 0.0
    %511 = vmatpush1.msra.mxu0 0.0
    %512 = vmatprep.subr.mxu0 0.0
    %513 = vmatpush1.msra.mxu0 0.0
    %514 = vmatprep.subr.mxu0 0.0
    %515 = vmatpush1.msra.mxu0 0.0
    %516 = vmatprep.subr.mxu0 0.0
    %517 = vmatpush1.msra.mxu0 0.0
    %518 = vmatprep.subr.mxu0 0.0
    %519 = vmatpush1.msra.mxu0 %v64
    %520 = vmatprep.subr.mxu0 0.0
    %521 = vmatpush1.msra.mxu0 %v63
    %522 = vmatprep.subr.mxu0 0.0
    %523 = vmatpush1.msra.mxu0 %v62
    %524 = vmatprep.subr.mxu0 0.0
    %525 = vmatpush1.msra.mxu0 %v61
    %526 = vmatprep.subr.mxu0 0.0
    %527 = vmatpush2.msra.mxu0 0.0
    %528 = vmatprep.subr.mxu0 0.0
    %529 = vmatpush2.msra.mxu0 0.0
    %530 = vmatprep.subr.mxu0 0.0
    %531 = vmatpush2.msra.mxu0 0.0
    %532 = vmatprep.subr.mxu0 0.0
    %533 = vmatpush2.msra.mxu0 0.0
    %534 = vmatprep.subr.mxu0 0.0
    %535 = vmatpush2.msra.mxu0 0.0
    %536 = vmatprep.subr.mxu0 0.0
    %537 = vmatpush2.msra.mxu0 0.0
    %538 = vmatprep.subr.mxu0 0.0
    %539 = vmatpush2.msra.mxu0 0.0
    %540 = vmatprep.subr.mxu0 0.0
    %541 = vmatpush2.msra.mxu0 0.0
    %542 = vmatprep.subr.mxu0 0.0
    %543 = vmatpush2.msra.mxu0 0.0
    %544 = vmatprep.subr.mxu0 0.0
    %545 = vmatpush2.msra.mxu0 0.0
    %546 = vmatprep.subr.mxu0 0.0
    %547 = vmatpush2.msra.mxu0 0.0
    %548 = vmatprep.subr.mxu0 0.0
    %549 = vmatpush2.msra.mxu0 0.0
    %550 = vmatprep.subr.mxu0 0.0
    %551 = vmatpush2.msra.mxu0 0.0
    %552 = vmatprep.subr.mxu0 0.0
    %553 = vmatpush2.msra.mxu0 0.0
    %554 = vmatprep.subr.mxu0 0.0
    %555 = vmatpush2.msra.mxu0 0.0
    %556 = vmatprep.subr.mxu0 0.0
    %557 = vmatpush2.msra.mxu0 0.0
    %558 = vmatprep.mubr.f32.mxu0 0.0
    %559 = vmatmul.mubr.f32.gmra.mxu0 %v492
    %v560 = vpop.f32.mrf.mxu0
    %v561 = vadd.f32 0.0, %v560
    %v562 = vpop.f32.mrf.mxu0
    %563 = vdwg.mxu0
    %v565 = vrot.slane %v561, 6
    %v566 = vrot.slane %v561, 7
    %v569 = vadd.f32 %v167, %v565
    %v570 = vadd.f32 %v172, %v566
    %v571 = vtanh.pop %v569
    %v572 = vtanh.pop %v570
    %v573 = vmul.f32 %v571, %v71
    %v574 = vmul.f32 %v572, %v71
    %v575 = vadd.f32 %v573, %v72
    %v576 = vadd.f32 %v574, %v72
    %v578 = vrot.slane %v471, 6
    %v579 = vrot.slane %v471, 7
    %580 = vrot.lane.b32.xlu0 %v578, 32
    %v581 = vpop.permute.xlu0 %580
    %582 = vrot.lane.b32.xlu0 %v579, 32
    %v583 = vpop.permute.xlu0 %582
    %v586 = vmul.f32 %v575, %v581
    %v587 = vmul.f32 %v576, %v583
    %590 = vrot.lane.b32.xlu0 %v575, 64
    %v591 = vpop.permute.xlu0 %590
    %592 = vrot.lane.b32.xlu0 %v576, 64
    %v593 = vpop.permute.xlu0 %592
    %v596 = vmul.f32 %v575, %v591
    %v597 = vmul.f32 %v576, %v593
    %600 = vrot.lane.b32.xlu0 %v596, 32
    %v601 = vpop.permute.xlu0 %600
    %602 = vrot.lane.b32.xlu0 %v597, 32
    %v603 = vpop.permute.xlu0 %602
    %v606 = vadd.f32 %v586, %v601
    %v607 = vadd.f32 %v587, %v603
    %v608 = vtanh.pop %v606
    %v609 = vtanh.pop %v607
    %612 = vrot.lane.b32.xlu0 %v608, 64
    %v613 = vpop.permute.xlu0 %612
    %614 = vrot.lane.b32.xlu0 %v609, 64
    %v615 = vpop.permute.xlu0 %614
    %v618 = vmul.f32 %v575, %v613
    %v619 = vmul.f32 %v576, %v615
    %620 = vset.pattern.permute.xlu0 2
    %621 = vperm.xlu0 %620, %v295
    %v622 = vpop.permute.xlu0 %621
    %vm623 = vcmp.eq.s32.totalorder %v622, 1
    %v626 = vrot.slane %v618, 2
    %v627 = vrot.slane %v619, 1
    %v628 = vsel %vm303, %v627, %v626
    %629 = vrot.lane.b32.xlu0 %v628, 32
    %v630 = vpop.permute.xlu0 %629
    %v632 = vsel %vm623, %v630, %v463
    %v635 = vrot.slane %v606, 2
    %v636 = vrot.slane %v607, 1
    %v637 = vsel %vm303, %v636, %v635
    %638 = vrot.lane.b32.xlu0 %v637, 96
    %v639 = vpop.permute.xlu0 %638
    %v641 = vsel %vm623, %v639, %v471
    %642 = vset.pattern.permute.xlu0 2
    %643 = vperm.xlu0 %642, %v317
    %v644 = vpop.permute.xlu0 %643
    %vm645 = vcmp.eq.s32.totalorder %v644, 1
    %v646 = vsel %vm645, %v630, %v476
    %v647 = vsel %vm623, %v630, 0.0
    %v650 = vunpack.c.l.s4 1983009808
    %v651 = vunpack.c.0.s8 %v650
    %v652 = vlaneseq
    %v653 = vshrl.u32 %v652, 7
    %v654 = vsub.s32 %v651, %v653
    %v655 = vrot.slane %v647, %v654
    %656 = vrot.lane.b32.xlu0 %v655, 64
    %v657 = vpop.permute.xlu0 %656
    %vm659 = vcmask 779776
    %660 = vst.msk [vmem:[%s5] sm:$0x3] %vm659, %v657
    %v662 = vsel %vm175, %v632, 0
    %664 = vmatprep.subr.mxu0 0.0
    %665 = vmatpush1.msra.mxu0 0.0
    %666 = vmatprep.subr.mxu0 0.0
    %667 = vmatpush1.msra.mxu0 0.0
    %668 = vmatprep.subr.mxu0 0.0
    %669 = vmatpush1.msra.mxu0 0.0
    %670 = vmatprep.subr.mxu0 0.0
    %671 = vmatpush1.msra.mxu0 0.0
    %672 = vmatprep.subr.mxu0 0.0
    %673 = vmatpush1.msra.mxu0 0.0
    %674 = vmatprep.subr.mxu0 0.0
    %675 = vmatpush1.msra.mxu0 0.0
    %676 = vmatprep.subr.mxu0 0.0
    %677 = vmatpush1.msra.mxu0 0.0
    %678 = vmatprep.subr.mxu0 0.0
    %679 = vmatpush1.msra.mxu0 0.0
    %680 = vmatprep.subr.mxu0 0.0
    %681 = vmatpush1.msra.mxu0 0.0
    %682 = vmatprep.subr.mxu0 0.0
    %683 = vmatpush1.msra.mxu0 0.0
    %684 = vmatprep.subr.mxu0 0.0
    %685 = vmatpush1.msra.mxu0 0.0
    %686 = vmatprep.subr.mxu0 0.0
    %687 = vmatpush1.msra.mxu0 0.0
    %688 = vmatprep.subr.mxu0 0.0
    %689 = vmatpush1.msra.mxu0 %v64
    %690 = vmatprep.subr.mxu0 0.0
    %691 = vmatpush1.msra.mxu0 %v63
    %692 = vmatprep.subr.mxu0 0.0
    %693 = vmatpush1.msra.mxu0 %v62
    %694 = vmatprep.subr.mxu0 0.0
    %695 = vmatpush1.msra.mxu0 %v61
    %696 = vmatprep.subr.mxu0 0.0
    %697 = vmatpush2.msra.mxu0 0.0
    %698 = vmatprep.subr.mxu0 0.0
    %699 = vmatpush2.msra.mxu0 0.0
    %700 = vmatprep.subr.mxu0 0.0
    %701 = vmatpush2.msra.mxu0 0.0
    %702 = vmatprep.subr.mxu0 0.0
    %703 = vmatpush2.msra.mxu0 0.0
    %704 = vmatprep.subr.mxu0 0.0
    %705 = vmatpush2.msra.mxu0 0.0
    %706 = vmatprep.subr.mxu0 0.0
    %707 = vmatpush2.msra.mxu0 0.0
    %708 = vmatprep.subr.mxu0 0.0
    %709 = vmatpush2.msra.mxu0 0.0
    %710 = vmatprep.subr.mxu0 0.0
    %711 = vmatpush2.msra.mxu0 0.0
    %712 = vmatprep.subr.mxu0 0.0
    %713 = vmatpush2.msra.mxu0 0.0
    %714 = vmatprep.subr.mxu0 0.0
    %715 = vmatpush2.msra.mxu0 0.0
    %716 = vmatprep.subr.mxu0 0.0
    %717 = vmatpush2.msra.mxu0 0.0
    %718 = vmatprep.subr.mxu0 0.0
    %719 = vmatpush2.msra.mxu0 0.0
    %720 = vmatprep.subr.mxu0 0.0
    %721 = vmatpush2.msra.mxu0 0.0
    %722 = vmatprep.subr.mxu0 0.0
    %723 = vmatpush2.msra.mxu0 0.0
    %724 = vmatprep.subr.mxu0 0.0
    %725 = vmatpush2.msra.mxu0 0.0
    %726 = vmatprep.subr.mxu0 0.0
    %727 = vmatpush2.msra.mxu0 0.0
    %728 = vmatprep.mubr.f32.mxu0 0.0
    %729 = vmatmul.mubr.f32.gmra.mxu0 %v662
    %v730 = vpop.f32.mrf.mxu0
    %v731 = vadd.f32 0.0, %v730
    %v732 = vpop.f32.mrf.mxu0
    %733 = vdwg.mxu0
    %v735 = vrot.slane %v731, 5
    %v736 = vrot.slane %v731, 6
    %v739 = vadd.f32 %v167, %v735
    %v740 = vadd.f32 %v172, %v736
    %v741 = vtanh.pop %v739
    %v742 = vtanh.pop %v740
    %v743 = vmul.f32 %v741, %v71
    %v744 = vmul.f32 %v742, %v71
    %v745 = vadd.f32 %v743, %v72
    %v746 = vadd.f32 %v744, %v72
    %v748 = vrot.slane %v641, 5
    %v749 = vrot.slane %v641, 6
    %750 = vrot.lane.b32.xlu0 %v748, 32
    %v751 = vpop.permute.xlu0 %750
    %752 = vrot.lane.b32.xlu0 %v749, 32
    %v753 = vpop.permute.xlu0 %752
    %v756 = vmul.f32 %v745, %v751
    %v757 = vmul.f32 %v746, %v753
    %760 = vrot.lane.b32.xlu0 %v745, 64
    %v761 = vpop.permute.xlu0 %760
    %762 = vrot.lane.b32.xlu0 %v746, 64
    %v763 = vpop.permute.xlu0 %762
    %v766 = vmul.f32 %v745, %v761
    %v767 = vmul.f32 %v746, %v763
    %770 = vrot.lane.b32.xlu0 %v766, 32
    %v771 = vpop.permute.xlu0 %770
    %772 = vrot.lane.b32.xlu0 %v767, 32
    %v773 = vpop.permute.xlu0 %772
    %v776 = vadd.f32 %v756, %v771
    %v777 = vadd.f32 %v757, %v773
    %v778 = vtanh.pop %v776
    %v779 = vtanh.pop %v777
    %782 = vrot.lane.b32.xlu0 %v778, 64
    %v783 = vpop.permute.xlu0 %782
    %784 = vrot.lane.b32.xlu0 %v779, 64
    %v785 = vpop.permute.xlu0 %784
    %v788 = vmul.f32 %v745, %v783
    %v789 = vmul.f32 %v746, %v785
    %790 = vset.pattern.permute.xlu0 3
    %791 = vperm.xlu0 %790, %v295
    %v792 = vpop.permute.xlu0 %791
    %vm793 = vcmp.eq.s32.totalorder %v792, 1
    %v796 = vrot.slane %v788, 3
    %v797 = vrot.slane %v789, 2
    %v798 = vsel %vm303, %v797, %v796
    %799 = vrot.lane.b32.xlu0 %v798, 32
    %v800 = vpop.permute.xlu0 %799
    %v802 = vsel %vm793, %v800, %v632
    %v805 = vrot.slane %v776, 3
    %v806 = vrot.slane %v777, 2
    %v807 = vsel %vm303, %v806, %v805
    %808 = vrot.lane.b32.xlu0 %v807, 96
    %v809 = vpop.permute.xlu0 %808
    %v811 = vsel %vm793, %v809, %v641
    %812 = vset.pattern.permute.xlu0 3
    %813 = vperm.xlu0 %812, %v317
    %v814 = vpop.permute.xlu0 %813
    %vm815 = vcmp.eq.s32.totalorder %v814, 1
    %v816 = vsel %vm815, %v800, %v646
    %v817 = vsel %vm793, %v800, 0.0
    %v820 = vunpack.c.l.s4 1983009808
    %v821 = vunpack.c.0.s8 %v820
    %v822 = vlaneseq
    %v823 = vshrl.u32 %v822, 7
    %v824 = vsub.s32 %v821, %v823
    %v825 = vrot.slane %v817, %v824
    %826 = vrot.lane.b32.xlu0 %v825, 96
    %v827 = vpop.permute.xlu0 %826
    %vm829 = vcmask 1042176
    %830 = vst.msk [vmem:[%s5] sm:$0x3] %vm829, %v827
    %v832 = vsel %vm175, %v802, 0
    %834 = vmatprep.subr.mxu0 0.0
    %835 = vmatpush1.msra.mxu0 0.0
    %836 = vmatprep.subr.mxu0 0.0
    %837 = vmatpush1.msra.mxu0 0.0
    %838 = vmatprep.subr.mxu0 0.0
    %839 = vmatpush1.msra.mxu0 0.0
    %840 = vmatprep.subr.mxu0 0.0
    %841 = vmatpush1.msra.mxu0 0.0
    %842 = vmatprep.subr.mxu0 0.0
    %843 = vmatpush1.msra.mxu0 0.0
    %844 = vmatprep.subr.mxu0 0.0
    %845 = vmatpush1.msra.mxu0 0.0
    %846 = vmatprep.subr.mxu0 0.0
    %847 = vmatpush1.msra.mxu0 0.0
    %848 = vmatprep.subr.mxu0 0.0
    %849 = vmatpush1.msra.mxu0 0.0
    %850 = vmatprep.subr.mxu0 0.0
    %851 = vmatpush1.msra.mxu0 0.0
    %852 = vmatprep.subr.mxu0 0.0
    %853 = vmatpush1.msra.mxu0 0.0
    %854 = vmatprep.subr.mxu0 0.0
    %855 = vmatpush1.msra.mxu0 0.0
    %856 = vmatprep.subr.mxu0 0.0
    %857 = vmatpush1.msra.mxu0 0.0
    %858 = vmatprep.subr.mxu0 0.0
    %859 = vmatpush1.msra.mxu0 %v64
    %860 = vmatprep.subr.mxu0 0.0
    %861 = vmatpush1.msra.mxu0 %v63
    %862 = vmatprep.subr.mxu0 0.0
    %863 = vmatpush1.msra.mxu0 %v62
    %864 = vmatprep.subr.mxu0 0.0
    %865 = vmatpush1.msra.mxu0 %v61
    %866 = vmatprep.subr.mxu0 0.0
    %867 = vmatpush2.msra.mxu0 0.0
    %868 = vmatprep.subr.mxu0 0.0
    %869 = vmatpush2.msra.mxu0 0.0
    %870 = vmatprep.subr.mxu0 0.0
    %871 = vmatpush2.msra.mxu0 0.0
    %872 = vmatprep.subr.mxu0 0.0
    %873 = vmatpush2.msra.mxu0 0.0
    %874 = vmatprep.subr.mxu0 0.0
    %875 = vmatpush2.msra.mxu0 0.0
    %876 = vmatprep.subr.mxu0 0.0
    %877 = vmatpush2.msra.mxu0 0.0
    %878 = vmatprep.subr.mxu0 0.0
    %879 = vmatpush2.msra.mxu0 0.0
    %880 = vmatprep.subr.mxu0 0.0
    %881 = vmatpush2.msra.mxu0 0.0
    %882 = vmatprep.subr.mxu0 0.0
    %883 = vmatpush2.msra.mxu0 0.0
    %884 = vmatprep.subr.mxu0 0.0
    %885 = vmatpush2.msra.mxu0 0.0
    %886 = vmatprep.subr.mxu0 0.0
    %887 = vmatpush2.msra.mxu0 0.0
    %888 = vmatprep.subr.mxu0 0.0
    %889 = vmatpush2.msra.mxu0 0.0
    %890 = vmatprep.subr.mxu0 0.0
    %891 = vmatpush2.msra.mxu0 0.0
    %892 = vmatprep.subr.mxu0 0.0
    %893 = vmatpush2.msra.mxu0 0.0
    %894 = vmatprep.subr.mxu0 0.0
    %895 = vmatpush2.msra.mxu0 0.0
    %896 = vmatprep.subr.mxu0 0.0
    %897 = vmatpush2.msra.mxu0 0.0
    %898 = vmatprep.mubr.f32.mxu0 0.0
    %899 = vmatmul.mubr.f32.gmra.mxu0 %v832
    %v900 = vpop.f32.mrf.mxu0
    %v901 = vadd.f32 0.0, %v900
    %v902 = vpop.f32.mrf.mxu0
    %903 = vdwg.mxu0
    %v905 = vrot.slane %v901, 4
    %v906 = vrot.slane %v901, 5
    %v909 = vadd.f32 %v167, %v905
    %v910 = vadd.f32 %v172, %v906
    %v911 = vtanh.pop %v909
    %v912 = vtanh.pop %v910
    %v913 = vmul.f32 %v911, %v71
    %v914 = vmul.f32 %v912, %v71
    %v915 = vadd.f32 %v913, %v72
    %v916 = vadd.f32 %v914, %v72
    %v918 = vrot.slane %v811, 4
    %v919 = vrot.slane %v811, 5
    %920 = vrot.lane.b32.xlu0 %v918, 32
    %v921 = vpop.permute.xlu0 %920
    %922 = vrot.lane.b32.xlu0 %v919, 32
    %v923 = vpop.permute.xlu0 %922
    %v926 = vmul.f32 %v915, %v921
    %v927 = vmul.f32 %v916, %v923
    %930 = vrot.lane.b32.xlu0 %v915, 64
    %v931 = vpop.permute.xlu0 %930
    %932 = vrot.lane.b32.xlu0 %v916, 64
    %v933 = vpop.permute.xlu0 %932
    %v936 = vmul.f32 %v915, %v931
    %v937 = vmul.f32 %v916, %v933
    %940 = vrot.lane.b32.xlu0 %v936, 32
    %v941 = vpop.permute.xlu0 %940
    %942 = vrot.lane.b32.xlu0 %v937, 32
    %v943 = vpop.permute.xlu0 %942
    %v946 = vadd.f32 %v926, %v941
    %v947 = vadd.f32 %v927, %v943
    %v948 = vtanh.pop %v946
    %v949 = vtanh.pop %v947
    %952 = vrot.lane.b32.xlu0 %v948, 64
    %v953 = vpop.permute.xlu0 %952
    %954 = vrot.lane.b32.xlu0 %v949, 64
    %v955 = vpop.permute.xlu0 %954
    %v958 = vmul.f32 %v915, %v953
    %v959 = vmul.f32 %v916, %v955
    %960 = vset.pattern.permute.xlu0 4
    %961 = vperm.xlu0 %960, %v295
    %v962 = vpop.permute.xlu0 %961
    %vm963 = vcmp.eq.s32.totalorder %v962, 1
    %v966 = vrot.slane %v958, 4
    %v967 = vrot.slane %v959, 3
    %v968 = vsel %vm303, %v967, %v966
    %969 = vrot.lane.b32.xlu0 %v968, 32
    %v970 = vpop.permute.xlu0 %969
    %v972 = vsel %vm963, %v970, %v802
    %v975 = vrot.slane %v946, 4
    %v976 = vrot.slane %v947, 3
    %v977 = vsel %vm303, %v976, %v975
    %978 = vrot.lane.b32.xlu0 %v977, 96
    %v979 = vpop.permute.xlu0 %978
    %v981 = vsel %vm963, %v979, %v811
    %982 = vset.pattern.permute.xlu0 4
    %983 = vperm.xlu0 %982, %v317
    %v984 = vpop.permute.xlu0 %983
    %vm985 = vcmp.eq.s32.totalorder %v984, 1
    %v986 = vsel %vm985, %v970, %v816
    %v987 = vsel %vm963, %v970, 0.0
    %988 = vst.msk [vmem:[%s5 + $0x2] sm:$0x3] %vm323, %v987
    %v990 = vsel %vm175, %v972, 0
    %992 = vmatprep.subr.mxu0 0.0
    %993 = vmatpush1.msra.mxu0 0.0
    %994 = vmatprep.subr.mxu0 0.0
    %995 = vmatpush1.msra.mxu0 0.0
    %996 = vmatprep.subr.mxu0 0.0
    %997 = vmatpush1.msra.mxu0 0.0
    %998 = vmatprep.subr.mxu0 0.0
    %999 = vmatpush1.msra.mxu0 0.0
    %1000 = vmatprep.subr.mxu0 0.0
    %1001 = vmatpush1.msra.mxu0 0.0
    %1002 = vmatprep.subr.mxu0 0.0
    %1003 = vmatpush1.msra.mxu0 0.0
    %1004 = vmatprep.subr.mxu0 0.0
    %1005 = vmatpush1.msra.mxu0 0.0
    %1006 = vmatprep.subr.mxu0 0.0
    %1007 = vmatpush1.msra.mxu0 0.0
    %1008 = vmatprep.subr.mxu0 0.0
    %1009 = vmatpush1.msra.mxu0 0.0
    %1010 = vmatprep.subr.mxu0 0.0
    %1011 = vmatpush1.msra.mxu0 0.0
    %1012 = vmatprep.subr.mxu0 0.0
    %1013 = vmatpush1.msra.mxu0 0.0
    %1014 = vmatprep.subr.mxu0 0.0
    %1015 = vmatpush1.msra.mxu0 0.0
    %1016 = vmatprep.subr.mxu0 0.0
    %1017 = vmatpush1.msra.mxu0 %v64
    %1018 = vmatprep.subr.mxu0 0.0
    %1019 = vmatpush1.msra.mxu0 %v63
    %1020 = vmatprep.subr.mxu0 0.0
    %1021 = vmatpush1.msra.mxu0 %v62
    %1022 = vmatprep.subr.mxu0 0.0
    %1023 = vmatpush1.msra.mxu0 %v61
    %1024 = vmatprep.subr.mxu0 0.0
    %1025 = vmatpush2.msra.mxu0 0.0
    %1026 = vmatprep.subr.mxu0 0.0
    %1027 = vmatpush2.msra.mxu0 0.0
    %1028 = vmatprep.subr.mxu0 0.0
    %1029 = vmatpush2.msra.mxu0 0.0
    %1030 = vmatprep.subr.mxu0 0.0
    %1031 = vmatpush2.msra.mxu0 0.0
    %1032 = vmatprep.subr.mxu0 0.0
    %1033 = vmatpush2.msra.mxu0 0.0
    %1034 = vmatprep.subr.mxu0 0.0
    %1035 = vmatpush2.msra.mxu0 0.0
    %1036 = vmatprep.subr.mxu0 0.0
    %1037 = vmatpush2.msra.mxu0 0.0
    %1038 = vmatprep.subr.mxu0 0.0
    %1039 = vmatpush2.msra.mxu0 0.0
    %1040 = vmatprep.subr.mxu0 0.0
    %1041 = vmatpush2.msra.mxu0 0.0
    %1042 = vmatprep.subr.mxu0 0.0
    %1043 = vmatpush2.msra.mxu0 0.0
    %1044 = vmatprep.subr.mxu0 0.0
    %1045 = vmatpush2.msra.mxu0 0.0
    %1046 = vmatprep.subr.mxu0 0.0
    %1047 = vmatpush2.msra.mxu0 0.0
    %1048 = vmatprep.subr.mxu0 0.0
    %1049 = vmatpush2.msra.mxu0 0.0
    %1050 = vmatprep.subr.mxu0 0.0
    %1051 = vmatpush2.msra.mxu0 0.0
    %1052 = vmatprep.subr.mxu0 0.0
    %1053 = vmatpush2.msra.mxu0 0.0
    %1054 = vmatprep.subr.mxu0 0.0
    %1055 = vmatpush2.msra.mxu0 0.0
    %1056 = vmatprep.mubr.f32.mxu0 0.0
    %1057 = vmatmul.mubr.f32.gmra.mxu0 %v990
    %v1058 = vpop.f32.mrf.mxu0
    %v1059 = vadd.f32 0.0, %v1058
    %v1060 = vpop.f32.mrf.mxu0
    %1061 = vdwg.mxu0
    %v1063 = vrot.slane %v1059, 3
    %v1064 = vrot.slane %v1059, 4
    %v1067 = vadd.f32 %v167, %v1063
    %v1068 = vadd.f32 %v172, %v1064
    %v1069 = vtanh.pop %v1067
    %v1070 = vtanh.pop %v1068
    %v1071 = vmul.f32 %v1069, %v71
    %v1072 = vmul.f32 %v1070, %v71
    %v1073 = vadd.f32 %v1071, %v72
    %v1074 = vadd.f32 %v1072, %v72
    %v1076 = vrot.slane %v981, 3
    %v1077 = vrot.slane %v981, 4
    %1078 = vrot.lane.b32.xlu0 %v1076, 32
    %v1079 = vpop.permute.xlu0 %1078
    %1080 = vrot.lane.b32.xlu0 %v1077, 32
    %v1081 = vpop.permute.xlu0 %1080
    %v1084 = vmul.f32 %v1073, %v1079
    %v1085 = vmul.f32 %v1074, %v1081
    %1088 = vrot.lane.b32.xlu0 %v1073, 64
    %v1089 = vpop.permute.xlu0 %1088
    %1090 = vrot.lane.b32.xlu0 %v1074, 64
    %v1091 = vpop.permute.xlu0 %1090
    %v1094 = vmul.f32 %v1073, %v1089
    %v1095 = vmul.f32 %v1074, %v1091
    %1098 = vrot.lane.b32.xlu0 %v1094, 32
    %v1099 = vpop.permute.xlu0 %1098
    %1100 = vrot.lane.b32.xlu0 %v1095, 32
    %v1101 = vpop.permute.xlu0 %1100
    %v1104 = vadd.f32 %v1084, %v1099
    %v1105 = vadd.f32 %v1085, %v1101
    %v1106 = vtanh.pop %v1104
    %v1107 = vtanh.pop %v1105
    %1110 = vrot.lane.b32.xlu0 %v1106, 64
    %v1111 = vpop.permute.xlu0 %1110
    %1112 = vrot.lane.b32.xlu0 %v1107, 64
    %v1113 = vpop.permute.xlu0 %1112
    %v1116 = vmul.f32 %v1073, %v1111
    %v1117 = vmul.f32 %v1074, %v1113
    %1118 = vset.pattern.permute.xlu0 5
    %1119 = vperm.xlu0 %1118, %v295
    %v1120 = vpop.permute.xlu0 %1119
    %vm1121 = vcmp.eq.s32.totalorder %v1120, 1
    %v1124 = vrot.slane %v1116, 5
    %v1125 = vrot.slane %v1117, 4
    %v1126 = vsel %vm303, %v1125, %v1124
    %1127 = vrot.lane.b32.xlu0 %v1126, 32
    %v1128 = vpop.permute.xlu0 %1127
    %v1130 = vsel %vm1121, %v1128, %v972
    %v1133 = vrot.slane %v1104, 5
    %v1134 = vrot.slane %v1105, 4
    %v1135 = vsel %vm303, %v1134, %v1133
    %1136 = vrot.lane.b32.xlu0 %v1135, 96
    %v1137 = vpop.permute.xlu0 %1136
    %v1139 = vsel %vm1121, %v1137, %v981
    %1140 = vset.pattern.permute.xlu0 5
    %1141 = vperm.xlu0 %1140, %v317
    %v1142 = vpop.permute.xlu0 %1141
    %vm1143 = vcmp.eq.s32.totalorder %v1142, 1
    %v1144 = vsel %vm1143, %v1128, %v986
    %v1145 = vsel %vm1121, %v1128, 0.0
    %v1148 = vunpack.c.l.s4 1983009808
    %v1149 = vunpack.c.0.s8 %v1148
    %v1150 = vlaneseq
    %v1151 = vshrl.u32 %v1150, 7
    %v1152 = vsub.s32 %v1149, %v1151
    %v1153 = vrot.slane %v1145, %v1152
    %1154 = vrot.lane.b32.xlu0 %v1153, 32
    %v1155 = vpop.permute.xlu0 %1154
    %1157 = vst.msk [vmem:[%s5 + $0x2] sm:$0x3] %vm489, %v1155
    %v1159 = vsel %vm175, %v1130, 0
    %1161 = vmatprep.subr.mxu0 0.0
    %1162 = vmatpush1.msra.mxu0 0.0
    %1163 = vmatprep.subr.mxu0 0.0
    %1164 = vmatpush1.msra.mxu0 0.0
    %1165 = vmatprep.subr.mxu0 0.0
    %1166 = vmatpush1.msra.mxu0 0.0
    %1167 = vmatprep.subr.mxu0 0.0
    %1168 = vmatpush1.msra.mxu0 0.0
    %1169 = vmatprep.subr.mxu0 0.0
    %1170 = vmatpush1.msra.mxu0 0.0
    %1171 = vmatprep.subr.mxu0 0.0
    %1172 = vmatpush1.msra.mxu0 0.0
    %1173 = vmatprep.subr.mxu0 0.0
    %1174 = vmatpush1.msra.mxu0 0.0
    %1175 = vmatprep.subr.mxu0 0.0
    %1176 = vmatpush1.msra.mxu0 0.0
    %1177 = vmatprep.subr.mxu0 0.0
    %1178 = vmatpush1.msra.mxu0 0.0
    %1179 = vmatprep.subr.mxu0 0.0
    %1180 = vmatpush1.msra.mxu0 0.0
    %1181 = vmatprep.subr.mxu0 0.0
    %1182 = vmatpush1.msra.mxu0 0.0
    %1183 = vmatprep.subr.mxu0 0.0
    %1184 = vmatpush1.msra.mxu0 0.0
    %1185 = vmatprep.subr.mxu0 0.0
    %1186 = vmatpush1.msra.mxu0 %v64
    %1187 = vmatprep.subr.mxu0 0.0
    %1188 = vmatpush1.msra.mxu0 %v63
    %1189 = vmatprep.subr.mxu0 0.0
    %1190 = vmatpush1.msra.mxu0 %v62
    %1191 = vmatprep.subr.mxu0 0.0
    %1192 = vmatpush1.msra.mxu0 %v61
    %1193 = vmatprep.subr.mxu0 0.0
    %1194 = vmatpush2.msra.mxu0 0.0
    %1195 = vmatprep.subr.mxu0 0.0
    %1196 = vmatpush2.msra.mxu0 0.0
    %1197 = vmatprep.subr.mxu0 0.0
    %1198 = vmatpush2.msra.mxu0 0.0
    %1199 = vmatprep.subr.mxu0 0.0
    %1200 = vmatpush2.msra.mxu0 0.0
    %1201 = vmatprep.subr.mxu0 0.0
    %1202 = vmatpush2.msra.mxu0 0.0
    %1203 = vmatprep.subr.mxu0 0.0
    %1204 = vmatpush2.msra.mxu0 0.0
    %1205 = vmatprep.subr.mxu0 0.0
    %1206 = vmatpush2.msra.mxu0 0.0
    %1207 = vmatprep.subr.mxu0 0.0
    %1208 = vmatpush2.msra.mxu0 0.0
    %1209 = vmatprep.subr.mxu0 0.0
    %1210 = vmatpush2.msra.mxu0 0.0
    %1211 = vmatprep.subr.mxu0 0.0
    %1212 = vmatpush2.msra.mxu0 0.0
    %1213 = vmatprep.subr.mxu0 0.0
    %1214 = vmatpush2.msra.mxu0 0.0
    %1215 = vmatprep.subr.mxu0 0.0
    %1216 = vmatpush2.msra.mxu0 0.0
    %1217 = vmatprep.subr.mxu0 0.0
    %1218 = vmatpush2.msra.mxu0 0.0
    %1219 = vmatprep.subr.mxu0 0.0
    %1220 = vmatpush2.msra.mxu0 0.0
    %1221 = vmatprep.subr.mxu0 0.0
    %1222 = vmatpush2.msra.mxu0 0.0
    %1223 = vmatprep.subr.mxu0 0.0
    %1224 = vmatpush2.msra.mxu0 0.0
    %1225 = vmatprep.mubr.f32.mxu0 0.0
    %1226 = vmatmul.mubr.f32.gmra.mxu0 %v1159
    %v1227 = vpop.f32.mrf.mxu0
    %v1228 = vadd.f32 0.0, %v1227
    %v1229 = vpop.f32.mrf.mxu0
    %1230 = vdwg.mxu0
    %v1232 = vrot.slane %v1228, 2
    %v1233 = vrot.slane %v1228, 3
    %v1236 = vadd.f32 %v167, %v1232
    %v1237 = vadd.f32 %v172, %v1233
    %v1238 = vtanh.pop %v1236
    %v1239 = vtanh.pop %v1237
    %v1240 = vmul.f32 %v1238, %v71
    %v1241 = vmul.f32 %v1239, %v71
    %v1242 = vadd.f32 %v1240, %v72
    %v1243 = vadd.f32 %v1241, %v72
    %v1245 = vrot.slane %v1139, 2
    %v1246 = vrot.slane %v1139, 3
    %1247 = vrot.lane.b32.xlu0 %v1245, 32
    %v1248 = vpop.permute.xlu0 %1247
    %1249 = vrot.lane.b32.xlu0 %v1246, 32
    %v1250 = vpop.permute.xlu0 %1249
    %v1253 = vmul.f32 %v1242, %v1248
    %v1254 = vmul.f32 %v1243, %v1250
    %1257 = vrot.lane.b32.xlu0 %v1242, 64
    %v1258 = vpop.permute.xlu0 %1257
    %1259 = vrot.lane.b32.xlu0 %v1243, 64
    %v1260 = vpop.permute.xlu0 %1259
    %v1263 = vmul.f32 %v1242, %v1258
    %v1264 = vmul.f32 %v1243, %v1260
    %1267 = vrot.lane.b32.xlu0 %v1263, 32
    %v1268 = vpop.permute.xlu0 %1267
    %1269 = vrot.lane.b32.xlu0 %v1264, 32
    %v1270 = vpop.permute.xlu0 %1269
    %v1273 = vadd.f32 %v1253, %v1268
    %v1274 = vadd.f32 %v1254, %v1270
    %v1275 = vtanh.pop %v1273
    %v1276 = vtanh.pop %v1274
    %1279 = vrot.lane.b32.xlu0 %v1275, 64
    %v1280 = vpop.permute.xlu0 %1279
    %1281 = vrot.lane.b32.xlu0 %v1276, 64
    %v1282 = vpop.permute.xlu0 %1281
    %v1285 = vmul.f32 %v1242, %v1280
    %v1286 = vmul.f32 %v1243, %v1282
    %1287 = vset.pattern.permute.xlu0 6
    %1288 = vperm.xlu0 %1287, %v295
    %v1289 = vpop.permute.xlu0 %1288
    %vm1290 = vcmp.eq.s32.totalorder %v1289, 1
    %v1293 = vrot.slane %v1285, 6
    %v1294 = vrot.slane %v1286, 5
    %v1295 = vsel %vm303, %v1294, %v1293
    %1296 = vrot.lane.b32.xlu0 %v1295, 32
    %v1297 = vpop.permute.xlu0 %1296
    %v1299 = vsel %vm1290, %v1297, %v1130
    %v1302 = vrot.slane %v1273, 6
    %v1303 = vrot.slane %v1274, 5
    %v1304 = vsel %vm303, %v1303, %v1302
    %1305 = vrot.lane.b32.xlu0 %v1304, 96
    %v1306 = vpop.permute.xlu0 %1305
    %v1308 = vsel %vm1290, %v1306, %v1139
    %1309 = vset.pattern.permute.xlu0 6
    %1310 = vperm.xlu0 %1309, %v317
    %v1311 = vpop.permute.xlu0 %1310
    %vm1312 = vcmp.eq.s32.totalorder %v1311, 1
    %v1313 = vsel %vm1312, %v1297, %v1144
    %v1314 = vsel %vm1290, %v1297, 0.0
    %v1317 = vunpack.c.l.s4 1983009808
    %v1318 = vunpack.c.0.s8 %v1317
    %v1319 = vlaneseq
    %v1320 = vshrl.u32 %v1319, 7
    %v1321 = vsub.s32 %v1318, %v1320
    %v1322 = vrot.slane %v1314, %v1321
    %1323 = vrot.lane.b32.xlu0 %v1322, 64
    %v1324 = vpop.permute.xlu0 %1323
    %1326 = vst.msk [vmem:[%s5 + $0x2] sm:$0x3] %vm659, %v1324
    %v1328 = vsel %vm175, %v1299, 0
    %1330 = vmatprep.subr.mxu0 0.0
    %1331 = vmatpush1.msra.mxu0 0.0
    %1332 = vmatprep.subr.mxu0 0.0
    %1333 = vmatpush1.msra.mxu0 0.0
    %1334 = vmatprep.subr.mxu0 0.0
    %1335 = vmatpush1.msra.mxu0 0.0
    %1336 = vmatprep.subr.mxu0 0.0
    %1337 = vmatpush1.msra.mxu0 0.0
    %1338 = vmatprep.subr.mxu0 0.0
    %1339 = vmatpush1.msra.mxu0 0.0
    %1340 = vmatprep.subr.mxu0 0.0
    %1341 = vmatpush1.msra.mxu0 0.0
    %1342 = vmatprep.subr.mxu0 0.0
    %1343 = vmatpush1.msra.mxu0 0.0
    %1344 = vmatprep.subr.mxu0 0.0
    %1345 = vmatpush1.msra.mxu0 0.0
    %1346 = vmatprep.subr.mxu0 0.0
    %1347 = vmatpush1.msra.mxu0 0.0
    %1348 = vmatprep.subr.mxu0 0.0
    %1349 = vmatpush1.msra.mxu0 0.0
    %1350 = vmatprep.subr.mxu0 0.0
    %1351 = vmatpush1.msra.mxu0 0.0
    %1352 = vmatprep.subr.mxu0 0.0
    %1353 = vmatpush1.msra.mxu0 0.0
    %1354 = vmatprep.subr.mxu0 0.0
    %1355 = vmatpush1.msra.mxu0 %v64
    %1356 = vmatprep.subr.mxu0 0.0
    %1357 = vmatpush1.msra.mxu0 %v63
    %1358 = vmatprep.subr.mxu0 0.0
    %1359 = vmatpush1.msra.mxu0 %v62
    %1360 = vmatprep.subr.mxu0 0.0
    %1361 = vmatpush1.msra.mxu0 %v61
    %1362 = vmatprep.subr.mxu0 0.0
    %1363 = vmatpush2.msra.mxu0 0.0
    %1364 = vmatprep.subr.mxu0 0.0
    %1365 = vmatpush2.msra.mxu0 0.0
    %1366 = vmatprep.subr.mxu0 0.0
    %1367 = vmatpush2.msra.mxu0 0.0
    %1368 = vmatprep.subr.mxu0 0.0
    %1369 = vmatpush2.msra.mxu0 0.0
    %1370 = vmatprep.subr.mxu0 0.0
    %1371 = vmatpush2.msra.mxu0 0.0
    %1372 = vmatprep.subr.mxu0 0.0
    %1373 = vmatpush2.msra.mxu0 0.0
    %1374 = vmatprep.subr.mxu0 0.0
    %1375 = vmatpush2.msra.mxu0 0.0
    %1376 = vmatprep.subr.mxu0 0.0
    %1377 = vmatpush2.msra.mxu0 0.0
    %1378 = vmatprep.subr.mxu0 0.0
    %1379 = vmatpush2.msra.mxu0 0.0
    %1380 = vmatprep.subr.mxu0 0.0
    %1381 = vmatpush2.msra.mxu0 0.0
    %1382 = vmatprep.subr.mxu0 0.0
    %1383 = vmatpush2.msra.mxu0 0.0
    %1384 = vmatprep.subr.mxu0 0.0
    %1385 = vmatpush2.msra.mxu0 0.0
    %1386 = vmatprep.subr.mxu0 0.0
    %1387 = vmatpush2.msra.mxu0 0.0
    %1388 = vmatprep.subr.mxu0 0.0
    %1389 = vmatpush2.msra.mxu0 0.0
    %1390 = vmatprep.subr.mxu0 0.0
    %1391 = vmatpush2.msra.mxu0 0.0
    %1392 = vmatprep.subr.mxu0 0.0
    %1393 = vmatpush2.msra.mxu0 0.0
    %1394 = vmatprep.mubr.f32.mxu0 0.0
    %1395 = vmatmul.mubr.f32.gmra.mxu0 %v1328
    %v1396 = vpop.f32.mrf.mxu0
    %v1397 = vadd.f32 0.0, %v1396
    %v1398 = vpop.f32.mrf.mxu0
    %1399 = vdwg.mxu0
    %v1401 = vrot.slane %v1397, 1
    %v1402 = vrot.slane %v1397, 2
    %v1405 = vadd.f32 %v167, %v1401
    %v1406 = vadd.f32 %v172, %v1402
    %v1407 = vtanh.pop %v1405
    %v1408 = vtanh.pop %v1406
    %v1409 = vmul.f32 %v1407, %v71
    %v1410 = vmul.f32 %v1408, %v71
    %v1411 = vadd.f32 %v1409, %v72
    %v1412 = vadd.f32 %v1410, %v72
    %v1414 = vrot.slane %v1308, 1
    %v1415 = vrot.slane %v1308, 2
    %1416 = vrot.lane.b32.xlu0 %v1414, 32
    %v1417 = vpop.permute.xlu0 %1416
    %1418 = vrot.lane.b32.xlu0 %v1415, 32
    %v1419 = vpop.permute.xlu0 %1418
    %v1422 = vmul.f32 %v1411, %v1417
    %v1423 = vmul.f32 %v1412, %v1419
    %1426 = vrot.lane.b32.xlu0 %v1411, 64
    %v1427 = vpop.permute.xlu0 %1426
    %1428 = vrot.lane.b32.xlu0 %v1412, 64
    %v1429 = vpop.permute.xlu0 %1428
    %v1432 = vmul.f32 %v1411, %v1427
    %v1433 = vmul.f32 %v1412, %v1429
    %1436 = vrot.lane.b32.xlu0 %v1432, 32
    %v1437 = vpop.permute.xlu0 %1436
    %1438 = vrot.lane.b32.xlu0 %v1433, 32
    %v1439 = vpop.permute.xlu0 %1438
    %v1442 = vadd.f32 %v1422, %v1437
    %v1443 = vadd.f32 %v1423, %v1439
    %v1444 = vtanh.pop %v1442
    %v1445 = vtanh.pop %v1443
    %1448 = vrot.lane.b32.xlu0 %v1444, 64
    %v1449 = vpop.permute.xlu0 %1448
    %1450 = vrot.lane.b32.xlu0 %v1445, 64
    %v1451 = vpop.permute.xlu0 %1450
    %v1454 = vmul.f32 %v1411, %v1449
    %v1455 = vmul.f32 %v1412, %v1451
    %1456 = vset.pattern.permute.xlu0 7
    %1457 = vperm.xlu0 %1456, %v295
    %v1458 = vpop.permute.xlu0 %1457
    %vm1459 = vcmp.eq.s32.totalorder %v1458, 1
    %v1462 = vrot.slane %v1454, 7
    %v1463 = vrot.slane %v1455, 6
    %v1464 = vsel %vm303, %v1463, %v1462
    %1465 = vrot.lane.b32.xlu0 %v1464, 32
    %v1466 = vpop.permute.xlu0 %1465
    %v1468 = vsel %vm1459, %v1466, %v1299
    %v1471 = vrot.slane %v1442, 7
    %v1472 = vrot.slane %v1443, 6
    %v1473 = vsel %vm303, %v1472, %v1471
    %1474 = vrot.lane.b32.xlu0 %v1473, 96
    %v1475 = vpop.permute.xlu0 %1474
    %v1477 = vsel %vm1459, %v1475, %v1308
    %1478 = vset.pattern.permute.xlu0 7
    %1479 = vperm.xlu0 %1478, %v317
    %v1480 = vpop.permute.xlu0 %1479
    %vm1481 = vcmp.eq.s32.totalorder %v1480, 1
    %v1482 = vsel %vm1481, %v1466, %v1313
    %v1483 = vsel %vm1459, %v1466, 0.0
    %v1486 = vunpack.c.l.s4 1983009808
    %v1487 = vunpack.c.0.s8 %v1486
    %v1488 = vlaneseq
    %v1489 = vshrl.u32 %v1488, 7
    %v1490 = vsub.s32 %v1487, %v1489
    %v1491 = vrot.slane %v1483, %v1490
    %1492 = vrot.lane.b32.xlu0 %v1491, 96
    %v1493 = vpop.permute.xlu0 %1492
    %1495 = vst.msk [vmem:[%s5 + $0x2] sm:$0x3] %vm829, %v1493
    %1497 = vrot.lane.b32.xlu0 %v1477, 32
    %v1498 = vpop.permute.xlu0 %1497
    %1501 = vrot.lane.b32.xlu0 %v1482, 64
    %v1502 = vpop.permute.xlu0 %1501
    %v1504 = vsel %vm175, %v1468, %v1498
    %vm1505 = vcmask 523264
    %v1506 = vsel %vm1505, %v1504, %v1502
    %vm1507 = vcmask 785408
    %v1508 = vsel %vm1507, %v1506, 0.0
    %1509 = vst [vmem:[%s5 + $0x4] sm:$0x3] %v1508
    // Predicated region
    $region34: #{encoder_forward.1} parent=1 // pred_check
      _
    $region35: #{encoder_forward.1} parent=1 // pred_check_branch
      %1511 = sbr.rel (0) target = $region37
    $region36: #{encoder_forward.1} parent=1 // pred_region
      _
    $region37: #{encoder_forward.1} parent=1 // pred_fallthru
      _
    // Predicated region
    $region38: #{encoder_forward.1} parent=1 // pred_check
      _
    $region39: #{encoder_forward.1} parent=1 // pred_check_branch
      %1513 = sbr.rel (0) target = $region41
    $region40: #{encoder_forward.1} parent=1 // pred_region
      _
    $region41: #{encoder_forward.1} parent=1 // pred_fallthru
      _
    %1514 = vsyncpa [#allocation3], 1
    %1515 = vsyncpa [#allocation5], 1

</llo_original>
